<compile_context>
chip_gen: v6e
topology: v6e:2x2x1
jax: 0.10.0
libtpu: 0.0.40
codegen_flags: <defaults>
</compile_context>

<pallas_src>
import jax
import jax.numpy as jnp
from jax.experimental import pallas as pl
from jax.experimental.pallas import tpu as pltpu

EPS = 1e-5


# ---------------------------------------------------------------------------
# Fused Pallas kernel: maxpool(2) -> conv3x3+BN+ReLU -> conv3x3+BN+ReLU
# ---------------------------------------------------------------------------
def _down_fused_kernel(x_ref, w1_ref, s1_ref, b1_ref, w2_ref, s2_ref, b2_ref,
                       o_ref, pat1_ref, pat2_ref):
    # x_ref : (1, 4, Hh, Wh, Cin) bf16 -- axis 1 = flattened 2x2 pooling window
    # w*_ref: (9*C_in, C_out)     bf16 -- im2col-ordered (ky, kx, cin) rows
    # s*/b* : (1, C_out)          f32  -- folded BatchNorm scale / shift
    # o_ref : (1, C2, Hh*Wh)           -- channels-first, spatial on the lane axis
    # pat*  : (Hh, Wh, 9*C) f32 VMEM scratch -- im2col staging (zeros = padding)
    _, _, Hh, Wh, _ = x_ref.shape

    # ---- MaxPool2d(2): pure VPU elementwise max over the pre-grouped window ----
    pooled = jnp.maximum(jnp.maximum(x_ref[0, 0], x_ref[0, 1]),
                         jnp.maximum(x_ref[0, 2], x_ref[0, 3])).astype(jnp.float32)

    def conv3x3_bn_relu(act, pat_ref, w_ref, s_ref, b_ref):
        # act: (Hh, Wh, C) f32.  padding=1 handled in-kernel: pat_ref is zeroed and
        # only in-bounds source rectangles are written.
        C = act.shape[-1]
        pat_ref[...] = jnp.zeros_like(pat_ref)
        for ky in range(3):
            i0, i1 = max(0, 1 - ky), min(Hh, Hh + 1 - ky)
            for kx in range(3):
                j0, j1 = max(0, 1 - kx), min(Wh, Wh + 1 - kx)
                g = ky * 3 + kx
                pat_ref[i0:i1, j0:j1, g * C:(g + 1) * C] = act[
                    i0 + ky - 1:i1 + ky - 1, j0 + kx - 1:j1 + kx - 1, :]
        # Single im2col matmul on the MXU: bf16 operands, f32 accumulation.
        patches = pat_ref[...].reshape(Hh * Wh, 9 * C).astype(w_ref.dtype)
        y = jnp.dot(patches, w_ref[...], preferred_element_type=jnp.float32)
        # BatchNorm (eval-mode folded affine) + ReLU, in f32.
        return jnp.maximum(y * s_ref[...] + b_ref[...], 0.0)

    h = conv3x3_bn_relu(pooled, pat1_ref, w1_ref, s1_ref, b1_ref)       # (Hh*Wh, C1)
    C1 = h.shape[-1]
    y = conv3x3_bn_relu(h.reshape(Hh, Wh, C1), pat2_ref,
                        w2_ref, s2_ref, b2_ref)                         # (Hh*Wh, C2)

    # Channels-first store with flattened spatial on lanes (lane-dense at real
    # sizes); the wrapper's NCHW output view is then a free contiguous reshape.
    o_ref[0] = y.T.astype(o_ref.dtype)


# ---------------------------------------------------------------------------
# Parameter folding + wrapper
# ---------------------------------------------------------------------------
def _fold_bn(p):
    cout, cin = p["w"].shape[0], p["w"].shape[1]
    scale = p["gamma"] / jnp.sqrt(p["var"] + EPS)
    shift = (p["b"] - p["mean"]) * scale + p["beta"]
    # OIHW -> HWIO -> rows ordered (ky*3*Cin + kx*Cin + cin), matching the kernel's
    # im2col column order.
    w = jnp.transpose(p["w"], (2, 3, 1, 0)).reshape(9 * cin, cout)
    return (w.astype(jnp.bfloat16),
            scale.reshape(1, cout).astype(jnp.float32),
            shift.reshape(1, cout).astype(jnp.float32))


@jax.jit
def down_forward(x_nchw, params):
    N, Cin, H, W = x_nchw.shape
    Hh, Wh = H // 2, W // 2
    w1, s1, b1 = _fold_bn(params["conv1"])
    w2, s2, b2 = _fold_bn(params["conv2"])
    C1, C2 = w1.shape[1], w2.shape[1]

    # Single fused boundary transform (one HBM copy pass, same cost as a bare
    # NCHW->NHWC transpose): crop to even spatial size (MaxPool2d floor behaviour),
    # group the 2x2 pooling window onto its own leading axis, channels-last, bf16.
    xg = (x_nchw[:, :, :2 * Hh, :2 * Wh]
          .astype(jnp.bfloat16)
          .reshape(N, Cin, Hh, 2, Wh, 2)
          .transpose(0, 3, 5, 2, 4, 1)
          .reshape(N, 4, Hh, Wh, Cin))

    out = pl.pallas_call(
        _down_fused_kernel,
        out_shape=jax.ShapeDtypeStruct((N, C2, Hh * Wh), x_nchw.dtype),
        grid=(N,),
        in_specs=[
            pl.BlockSpec((1, 4, Hh, Wh, Cin), lambda n: (n, 0, 0, 0, 0)),
            pl.BlockSpec((9 * Cin, C1), lambda n: (0, 0)),
            pl.BlockSpec((1, C1), lambda n: (0, 0)),
            pl.BlockSpec((1, C1), lambda n: (0, 0)),
            pl.BlockSpec((9 * C1, C2), lambda n: (0, 0)),
            pl.BlockSpec((1, C2), lambda n: (0, 0)),
            pl.BlockSpec((1, C2), lambda n: (0, 0)),
        ],
        out_specs=pl.BlockSpec((1, C2, Hh * Wh), lambda n: (n, 0, 0)),
        scratch_shapes=[
            pltpu.VMEM((Hh, Wh, 9 * Cin), jnp.float32),   # im2col staging, conv1
            pltpu.VMEM((Hh, Wh, 9 * C1), jnp.float32),    # im2col staging, conv2
        ],
        compiler_params=pltpu.CompilerParams(
            dimension_semantics=("parallel",),
            vmem_limit_bytes=32 * 1024 * 1024,
        ),
    )(xg, w1, s1, b1, w2, s2, b2)

    # Kernel already wrote channels-first; NCHW is a free contiguous reshape.
    return out.reshape(N, C2, Hh, Wh)


# ---------------------------------------------------------------------------
# Parameters (deterministic synthetic init, shapes per the nn.Module __init__)
# ---------------------------------------------------------------------------
def init_down_params(key, in_channels, out_channels):
    ks = jax.random.split(key, 12)

    def conv_bn(k0, k1, k2, k3, k4, k5, cin, cout):
        return dict(
            w=0.1 * jax.random.normal(k0, (cout, cin, 3, 3), jnp.float32),   # OIHW
            b=0.1 * jax.random.normal(k1, (cout,), jnp.float32),
            gamma=1.0 + 0.1 * jax.random.normal(k2, (cout,), jnp.float32),
            beta=0.1 * jax.random.normal(k3, (cout,), jnp.float32),
            mean=0.1 * jax.random.normal(k4, (cout,), jnp.float32),
            var=jax.random.uniform(k5, (cout,), jnp.float32, 0.5, 1.5),
        )

    return dict(
        conv1=conv_bn(*ks[0:6], in_channels, out_channels),
        conv2=conv_bn(*ks[6:12], out_channels, out_channels),
    )


# ---------------------------------------------------------------------------
# Pure-JAX f32 reference (PyTorch eval-mode semantics)
# ---------------------------------------------------------------------------
def down_reference(x_nchw, params):
    N, C, H, W = x_nchw.shape
    x = x_nchw.reshape(N, C, H // 2, 2, W // 2, 2).max(axis=(3, 5))
    for name in ("conv1", "conv2"):
        p = params[name]
        y = jax.lax.conv_general_dilated(
            x, p["w"], window_strides=(1, 1), padding=((1, 1), (1, 1)),
            dimension_numbers=("NCHW", "OIHW", "NCHW"))
        y = y + p["b"][None, :, None, None]
        y = (y - p["mean"][None, :, None, None]) / jnp.sqrt(
            p["var"][None, :, None, None] + EPS)
        y = y * p["gamma"][None, :, None, None] + p["beta"][None, :, None, None]
        x = jnp.maximum(y, 0.0)
    return x


if __name__ == "__main__":
    key = jax.random.PRNGKey(0)
    kx, kp = jax.random.split(key)

    in_channels, out_channels = 4, 8
    x = jax.random.normal(kx, (2, in_channels, 16, 16), jnp.float32)  # NCHW, as PyTorch
    params = init_down_params(kp, in_channels, out_channels)

    out = jax.block_until_ready(down_forward(x, params))
    ref = jax.block_until_ready(down_reference(x, params))

    assert out.shape == (2, out_channels, 8, 8), out.shape
    # bf16 MXU operands (per perf review) -> tolerance loosened vs the f32
    # reference; any layout / indexing bug would produce O(1) errors and still fail.
    assert jnp.allclose(out, ref, atol=1e-1, rtol=1e-1), \
        f"max abs err = {float(jnp.max(jnp.abs(out - ref)))}"
    print("KERNEL_OK")
</pallas_src>

<mosaic_0001>
module attributes {stable_mosaic.version = 11 : i64} {
  func.func @_down_fused_kernel(%arg0: i32, %arg1: memref<1x4x8x8x4xbf16, #tpu.memory_space<vmem>>, %arg2: memref<36x8xbf16, #tpu.memory_space<vmem>>, %arg3: memref<1x8xf32, #tpu.memory_space<vmem>>, %arg4: memref<1x8xf32, #tpu.memory_space<vmem>>, %arg5: memref<72x8xbf16, #tpu.memory_space<vmem>>, %arg6: memref<1x8xf32, #tpu.memory_space<vmem>>, %arg7: memref<1x8xf32, #tpu.memory_space<vmem>>, %arg8: memref<1x8x64xf32, #tpu.memory_space<vmem>>, %arg9: memref<8x8x36xf32, #tpu.memory_space<vmem>>, %arg10: memref<8x8x72xf32, #tpu.memory_space<vmem>>) attributes {dimension_semantics = [#tpu.dimension_semantics<parallel>], iteration_bounds = array<i64: 2>, scalar_prefetch = 0 : i64, scratch_operands = 2 : i64, tpu.core_type = #tpu.core_type<tc>, window_params = [{transform_indices = @transform_0, window_bounds = array<i64: 1, 4, 8, 8, 4>}, {pipeline_mode = #tpu.pipeline_mode<synchronous>, transform_indices = @transform_1, window_bounds = array<i64: 36, 8>}, {pipeline_mode = #tpu.pipeline_mode<synchronous>, transform_indices = @transform_2, window_bounds = array<i64: 1, 8>}, {pipeline_mode = #tpu.pipeline_mode<synchronous>, transform_indices = @transform_3, window_bounds = array<i64: 1, 8>}, {pipeline_mode = #tpu.pipeline_mode<synchronous>, transform_indices = @transform_4, window_bounds = array<i64: 72, 8>}, {pipeline_mode = #tpu.pipeline_mode<synchronous>, transform_indices = @transform_5, window_bounds = array<i64: 1, 8>}, {pipeline_mode = #tpu.pipeline_mode<synchronous>, transform_indices = @transform_6, window_bounds = array<i64: 1, 8>}, {transform_indices = @transform_7, window_bounds = array<i64: 1, 8, 64>}]} {
    %c0 = arith.constant 0 : index
    %c0_0 = arith.constant 0 : index
    %c0_1 = arith.constant 0 : index
    %c0_2 = arith.constant 0 : index
    %c0_3 = arith.constant 0 : index
    %0 = vector.load %arg1[%c0, %c0_0, %c0_1, %c0_2, %c0_3] : memref<1x4x8x8x4xbf16, #tpu.memory_space<vmem>>, vector<1x1x8x8x4xbf16>
    %1 = vector.shape_cast %0 : vector<1x1x8x8x4xbf16> to vector<8x8x4xbf16>
    %c0_4 = arith.constant 0 : index
    %c1 = arith.constant 1 : index
    %c0_5 = arith.constant 0 : index
    %c0_6 = arith.constant 0 : index
    %c0_7 = arith.constant 0 : index
    %2 = vector.load %arg1[%c0_4, %c1, %c0_5, %c0_6, %c0_7] : memref<1x4x8x8x4xbf16, #tpu.memory_space<vmem>>, vector<1x1x8x8x4xbf16>
    %3 = vector.shape_cast %2 : vector<1x1x8x8x4xbf16> to vector<8x8x4xbf16>
    %4 = arith.maximumf %1, %3 : vector<8x8x4xbf16>
    %c0_8 = arith.constant 0 : index
    %c2 = arith.constant 2 : index
    %c0_9 = arith.constant 0 : index
    %c0_10 = arith.constant 0 : index
    %c0_11 = arith.constant 0 : index
    %5 = vector.load %arg1[%c0_8, %c2, %c0_9, %c0_10, %c0_11] : memref<1x4x8x8x4xbf16, #tpu.memory_space<vmem>>, vector<1x1x8x8x4xbf16>
    %6 = vector.shape_cast %5 : vector<1x1x8x8x4xbf16> to vector<8x8x4xbf16>
    %c0_12 = arith.constant 0 : index
    %c3 = arith.constant 3 : index
    %c0_13 = arith.constant 0 : index
    %c0_14 = arith.constant 0 : index
    %c0_15 = arith.constant 0 : index
    %7 = vector.load %arg1[%c0_12, %c3, %c0_13, %c0_14, %c0_15] : memref<1x4x8x8x4xbf16, #tpu.memory_space<vmem>>, vector<1x1x8x8x4xbf16>
    %8 = vector.shape_cast %7 : vector<1x1x8x8x4xbf16> to vector<8x8x4xbf16>
    %9 = arith.maximumf %6, %8 : vector<8x8x4xbf16>
    %10 = arith.maximumf %4, %9 : vector<8x8x4xbf16>
    %11 = arith.extf %10 : vector<8x8x4xbf16> to vector<8x8x4xf32>
    %cst = arith.constant 0.000000e+00 : f32
    %12 = vector.broadcast %cst : f32 to vector<8x8x36xf32>
    %c0_16 = arith.constant 0 : index
    %c0_17 = arith.constant 0 : index
    %c0_18 = arith.constant 0 : index
    %13 = vector.load %arg9[%c0_16, %c0_17, %c0_18] : memref<8x8x36xf32, #tpu.memory_space<vmem>>, vector<8x8x36xf32>
    tpu.vector_store %arg9[%c0_16, %c0_17, %c0_18], %12 {strides = array<i32>} : memref<8x8x36xf32, #tpu.memory_space<vmem>>, vector<8x8x36xf32>,
    %14 = vector.extract_strided_slice %11 {offsets = [0, 0, 0], sizes = [7, 7, 4], strides = [1, 1, 1]} : vector<8x8x4xf32> to vector<7x7x4xf32>
    %c1_19 = arith.constant 1 : index
    %c1_20 = arith.constant 1 : index
    %c0_21 = arith.constant 0 : index
    %15 = vector.load %arg9[%c1_19, %c1_20, %c0_21] : memref<8x8x36xf32, #tpu.memory_space<vmem>>, vector<7x7x4xf32>
    tpu.vector_store %arg9[%c1_19, %c1_20, %c0_21], %14 {strides = array<i32>} : memref<8x8x36xf32, #tpu.memory_space<vmem>>, vector<7x7x4xf32>,
    %16 = vector.extract_strided_slice %11 {offsets = [0, 0, 0], sizes = [7, 8, 4], strides = [1, 1, 1]} : vector<8x8x4xf32> to vector<7x8x4xf32>
    %c1_22 = arith.constant 1 : index
    %c0_23 = arith.constant 0 : index
    %c4 = arith.constant 4 : index
    %17 = vector.load %arg9[%c1_22, %c0_23, %c4] : memref<8x8x36xf32, #tpu.memory_space<vmem>>, vector<7x8x4xf32>
    tpu.vector_store %arg9[%c1_22, %c0_23, %c4], %16 {strides = array<i32>} : memref<8x8x36xf32, #tpu.memory_space<vmem>>, vector<7x8x4xf32>,
    %18 = vector.extract_strided_slice %11 {offsets = [0, 1, 0], sizes = [7, 7, 4], strides = [1, 1, 1]} : vector<8x8x4xf32> to vector<7x7x4xf32>
    %c1_24 = arith.constant 1 : index
    %c0_25 = arith.constant 0 : index
    %c8 = arith.constant 8 : index
    %19 = vector.load %arg9[%c1_24, %c0_25, %c8] : memref<8x8x36xf32, #tpu.memory_space<vmem>>, vector<7x7x4xf32>
    tpu.vector_store %arg9[%c1_24, %c0_25, %c8], %18 {strides = array<i32>} : memref<8x8x36xf32, #tpu.memory_space<vmem>>, vector<7x7x4xf32>,
    %20 = vector.extract_strided_slice %11 {offsets = [0, 0, 0], sizes = [8, 7, 4], strides = [1, 1, 1]} : vector<8x8x4xf32> to vector<8x7x4xf32>
    %c0_26 = arith.constant 0 : index
    %c1_27 = arith.constant 1 : index
    %c12 = arith.constant 12 : index
    %21 = vector.load %arg9[%c0_26, %c1_27, %c12] : memref<8x8x36xf32, #tpu.memory_space<vmem>>, vector<8x7x4xf32>
    tpu.vector_store %arg9[%c0_26, %c1_27, %c12], %20 {strides = array<i32>} : memref<8x8x36xf32, #tpu.memory_space<vmem>>, vector<8x7x4xf32>,
    %c0_28 = arith.constant 0 : index
    %c0_29 = arith.constant 0 : index
    %c16 = arith.constant 16 : index
    %22 = vector.load %arg9[%c0_28, %c0_29, %c16] : memref<8x8x36xf32, #tpu.memory_space<vmem>>, vector<8x8x4xf32>
    tpu.vector_store %arg9[%c0_28, %c0_29, %c16], %11 {strides = array<i32>} : memref<8x8x36xf32, #tpu.memory_space<vmem>>, vector<8x8x4xf32>,
    %23 = vector.extract_strided_slice %11 {offsets = [0, 1, 0], sizes = [8, 7, 4], strides = [1, 1, 1]} : vector<8x8x4xf32> to vector<8x7x4xf32>
    %c0_30 = arith.constant 0 : index
    %c0_31 = arith.constant 0 : index
    %c20 = arith.constant 20 : index
    %24 = vector.load %arg9[%c0_30, %c0_31, %c20] : memref<8x8x36xf32, #tpu.memory_space<vmem>>, vector<8x7x4xf32>
    tpu.vector_store %arg9[%c0_30, %c0_31, %c20], %23 {strides = array<i32>} : memref<8x8x36xf32, #tpu.memory_space<vmem>>, vector<8x7x4xf32>,
    %25 = vector.extract_strided_slice %11 {offsets = [1, 0, 0], sizes = [7, 7, 4], strides = [1, 1, 1]} : vector<8x8x4xf32> to vector<7x7x4xf32>
    %c0_32 = arith.constant 0 : index
    %c1_33 = arith.constant 1 : index
    %c24 = arith.constant 24 : index
    %26 = vector.load %arg9[%c0_32, %c1_33, %c24] : memref<8x8x36xf32, #tpu.memory_space<vmem>>, vector<7x7x4xf32>
    tpu.vector_store %arg9[%c0_32, %c1_33, %c24], %25 {strides = array<i32>} : memref<8x8x36xf32, #tpu.memory_space<vmem>>, vector<7x7x4xf32>,
    %27 = vector.extract_strided_slice %11 {offsets = [1, 0, 0], sizes = [7, 8, 4], strides = [1, 1, 1]} : vector<8x8x4xf32> to vector<7x8x4xf32>
    %c0_34 = arith.constant 0 : index
    %c0_35 = arith.constant 0 : index
    %c28 = arith.constant 28 : index
    %28 = vector.load %arg9[%c0_34, %c0_35, %c28] : memref<8x8x36xf32, #tpu.memory_space<vmem>>, vector<7x8x4xf32>
    tpu.vector_store %arg9[%c0_34, %c0_35, %c28], %27 {strides = array<i32>} : memref<8x8x36xf32, #tpu.memory_space<vmem>>, vector<7x8x4xf32>,
    %29 = vector.extract_strided_slice %11 {offsets = [1, 1, 0], sizes = [7, 7, 4], strides = [1, 1, 1]} : vector<8x8x4xf32> to vector<7x7x4xf32>
    %c0_36 = arith.constant 0 : index
    %c0_37 = arith.constant 0 : index
    %c32 = arith.constant 32 : index
    %30 = vector.load %arg9[%c0_36, %c0_37, %c32] : memref<8x8x36xf32, #tpu.memory_space<vmem>>, vector<7x7x4xf32>
    tpu.vector_store %arg9[%c0_36, %c0_37, %c32], %29 {strides = array<i32>} : memref<8x8x36xf32, #tpu.memory_space<vmem>>, vector<7x7x4xf32>,
    %c0_38 = arith.constant 0 : index
    %c0_39 = arith.constant 0 : index
    %c0_40 = arith.constant 0 : index
    %31 = vector.load %arg9[%c0_38, %c0_39, %c0_40] : memref<8x8x36xf32, #tpu.memory_space<vmem>>, vector<8x8x36xf32>
    %32 = vector.shape_cast %31 : vector<8x8x36xf32> to vector<64x36xf32>
    %33 = arith.truncf %32 : vector<64x36xf32> to vector<64x36xbf16>
    %c0_41 = arith.constant 0 : index
    %c0_42 = arith.constant 0 : index
    %34 = vector.load %arg2[%c0_41, %c0_42] : memref<36x8xbf16, #tpu.memory_space<vmem>>, vector<36x8xbf16>
    %cst_43 = arith.constant dense<0.000000e+00> : vector<64x8xf32>
    %35 = tpu.matmul %33, %34, %cst_43 {dimension_numbers = #tpu.dot_dimension_numbers<[1], [0], [0], [1], [0, 0, 1, 1], [], []>} : vector<64x36xbf16>, vector<36x8xbf16>, vector<64x8xf32> -> vector<64x8xf32>
    %c0_44 = arith.constant 0 : index
    %c0_45 = arith.constant 0 : index
    %36 = vector.load %arg3[%c0_44, %c0_45] : memref<1x8xf32, #tpu.memory_space<vmem>>, vector<1x8xf32>
    %37 = vector.broadcast %36 : vector<1x8xf32> to vector<64x8xf32>
    %38 = arith.mulf %35, %37 : vector<64x8xf32>
    %c0_46 = arith.constant 0 : index
    %c0_47 = arith.constant 0 : index
    %39 = vector.load %arg4[%c0_46, %c0_47] : memref<1x8xf32, #tpu.memory_space<vmem>>, vector<1x8xf32>
    %40 = vector.broadcast %39 : vector<1x8xf32> to vector<64x8xf32>
    %41 = arith.addf %38, %40 : vector<64x8xf32>
    %cst_48 = arith.constant 0.000000e+00 : f32
    %42 = vector.broadcast %cst_48 : f32 to vector<64x8xf32>
    %43 = arith.maximumf %41, %42 : vector<64x8xf32>
    %44 = vector.shape_cast %43 : vector<64x8xf32> to vector<8x8x8xf32>
    %cst_49 = arith.constant 0.000000e+00 : f32
    %45 = vector.broadcast %cst_49 : f32 to vector<8x8x72xf32>
    %c0_50 = arith.constant 0 : index
    %c0_51 = arith.constant 0 : index
    %c0_52 = arith.constant 0 : index
    %46 = vector.load %arg10[%c0_50, %c0_51, %c0_52] : memref<8x8x72xf32, #tpu.memory_space<vmem>>, vector<8x8x72xf32>
    tpu.vector_store %arg10[%c0_50, %c0_51, %c0_52], %45 {strides = array<i32>} : memref<8x8x72xf32, #tpu.memory_space<vmem>>, vector<8x8x72xf32>,
    %47 = vector.extract_strided_slice %44 {offsets = [0, 0, 0], sizes = [7, 7, 8], strides = [1, 1, 1]} : vector<8x8x8xf32> to vector<7x7x8xf32>
    %c1_53 = arith.constant 1 : index
    %c1_54 = arith.constant 1 : index
    %c0_55 = arith.constant 0 : index
    %48 = vector.load %arg10[%c1_53, %c1_54, %c0_55] : memref<8x8x72xf32, #tpu.memory_space<vmem>>, vector<7x7x8xf32>
    tpu.vector_store %arg10[%c1_53, %c1_54, %c0_55], %47 {strides = array<i32>} : memref<8x8x72xf32, #tpu.memory_space<vmem>>, vector<7x7x8xf32>,
    %49 = vector.extract_strided_slice %44 {offsets = [0, 0, 0], sizes = [7, 8, 8], strides = [1, 1, 1]} : vector<8x8x8xf32> to vector<7x8x8xf32>
    %c1_56 = arith.constant 1 : index
    %c0_57 = arith.constant 0 : index
    %c8_58 = arith.constant 8 : index
    %50 = vector.load %arg10[%c1_56, %c0_57, %c8_58] : memref<8x8x72xf32, #tpu.memory_space<vmem>>, vector<7x8x8xf32>
    tpu.vector_store %arg10[%c1_56, %c0_57, %c8_58], %49 {strides = array<i32>} : memref<8x8x72xf32, #tpu.memory_space<vmem>>, vector<7x8x8xf32>,
    %51 = vector.extract_strided_slice %44 {offsets = [0, 1, 0], sizes = [7, 7, 8], strides = [1, 1, 1]} : vector<8x8x8xf32> to vector<7x7x8xf32>
    %c1_59 = arith.constant 1 : index
    %c0_60 = arith.constant 0 : index
    %c16_61 = arith.constant 16 : index
    %52 = vector.load %arg10[%c1_59, %c0_60, %c16_61] : memref<8x8x72xf32, #tpu.memory_space<vmem>>, vector<7x7x8xf32>
    tpu.vector_store %arg10[%c1_59, %c0_60, %c16_61], %51 {strides = array<i32>} : memref<8x8x72xf32, #tpu.memory_space<vmem>>, vector<7x7x8xf32>,
    %53 = vector.extract_strided_slice %44 {offsets = [0, 0, 0], sizes = [8, 7, 8], strides = [1, 1, 1]} : vector<8x8x8xf32> to vector<8x7x8xf32>
    %c0_62 = arith.constant 0 : index
    %c1_63 = arith.constant 1 : index
    %c24_64 = arith.constant 24 : index
    %54 = vector.load %arg10[%c0_62, %c1_63, %c24_64] : memref<8x8x72xf32, #tpu.memory_space<vmem>>, vector<8x7x8xf32>
    tpu.vector_store %arg10[%c0_62, %c1_63, %c24_64], %53 {strides = array<i32>} : memref<8x8x72xf32, #tpu.memory_space<vmem>>, vector<8x7x8xf32>,
    %c0_65 = arith.constant 0 : index
    %c0_66 = arith.constant 0 : index
    %c32_67 = arith.constant 32 : index
    %55 = vector.load %arg10[%c0_65, %c0_66, %c32_67] : memref<8x8x72xf32, #tpu.memory_space<vmem>>, vector<8x8x8xf32>
    tpu.vector_store %arg10[%c0_65, %c0_66, %c32_67], %44 {strides = array<i32>} : memref<8x8x72xf32, #tpu.memory_space<vmem>>, vector<8x8x8xf32>,
    %56 = vector.extract_strided_slice %44 {offsets = [0, 1, 0], sizes = [8, 7, 8], strides = [1, 1, 1]} : vector<8x8x8xf32> to vector<8x7x8xf32>
    %c0_68 = arith.constant 0 : index
    %c0_69 = arith.constant 0 : index
    %c40 = arith.constant 40 : index
    %57 = vector.load %arg10[%c0_68, %c0_69, %c40] : memref<8x8x72xf32, #tpu.memory_space<vmem>>, vector<8x7x8xf32>
    tpu.vector_store %arg10[%c0_68, %c0_69, %c40], %56 {strides = array<i32>} : memref<8x8x72xf32, #tpu.memory_space<vmem>>, vector<8x7x8xf32>,
    %58 = vector.extract_strided_slice %44 {offsets = [1, 0, 0], sizes = [7, 7, 8], strides = [1, 1, 1]} : vector<8x8x8xf32> to vector<7x7x8xf32>
    %c0_70 = arith.constant 0 : index
    %c1_71 = arith.constant 1 : index
    %c48 = arith.constant 48 : index
    %59 = vector.load %arg10[%c0_70, %c1_71, %c48] : memref<8x8x72xf32, #tpu.memory_space<vmem>>, vector<7x7x8xf32>
    tpu.vector_store %arg10[%c0_70, %c1_71, %c48], %58 {strides = array<i32>} : memref<8x8x72xf32, #tpu.memory_space<vmem>>, vector<7x7x8xf32>,
    %60 = vector.extract_strided_slice %44 {offsets = [1, 0, 0], sizes = [7, 8, 8], strides = [1, 1, 1]} : vector<8x8x8xf32> to vector<7x8x8xf32>
    %c0_72 = arith.constant 0 : index
    %c0_73 = arith.constant 0 : index
    %c56 = arith.constant 56 : index
    %61 = vector.load %arg10[%c0_72, %c0_73, %c56] : memref<8x8x72xf32, #tpu.memory_space<vmem>>, vector<7x8x8xf32>
    tpu.vector_store %arg10[%c0_72, %c0_73, %c56], %60 {strides = array<i32>} : memref<8x8x72xf32, #tpu.memory_space<vmem>>, vector<7x8x8xf32>,
    %62 = vector.extract_strided_slice %44 {offsets = [1, 1, 0], sizes = [7, 7, 8], strides = [1, 1, 1]} : vector<8x8x8xf32> to vector<7x7x8xf32>
    %c0_74 = arith.constant 0 : index
    %c0_75 = arith.constant 0 : index
    %c64 = arith.constant 64 : index
    %63 = vector.load %arg10[%c0_74, %c0_75, %c64] : memref<8x8x72xf32, #tpu.memory_space<vmem>>, vector<7x7x8xf32>
    tpu.vector_store %arg10[%c0_74, %c0_75, %c64], %62 {strides = array<i32>} : memref<8x8x72xf32, #tpu.memory_space<vmem>>, vector<7x7x8xf32>,
    %c0_76 = arith.constant 0 : index
    %c0_77 = arith.constant 0 : index
    %c0_78 = arith.constant 0 : index
    %64 = vector.load %arg10[%c0_76, %c0_77, %c0_78] : memref<8x8x72xf32, #tpu.memory_space<vmem>>, vector<8x8x72xf32>
    %65 = vector.shape_cast %64 : vector<8x8x72xf32> to vector<64x72xf32>
    %66 = arith.truncf %65 : vector<64x72xf32> to vector<64x72xbf16>
    %c0_79 = arith.constant 0 : index
    %c0_80 = arith.constant 0 : index
    %67 = vector.load %arg5[%c0_79, %c0_80] : memref<72x8xbf16, #tpu.memory_space<vmem>>, vector<72x8xbf16>
    %cst_81 = arith.constant dense<0.000000e+00> : vector<64x8xf32>
    %68 = tpu.matmul %66, %67, %cst_81 {dimension_numbers = #tpu.dot_dimension_numbers<[1], [0], [0], [1], [0, 0, 1, 1], [], []>} : vector<64x72xbf16>, vector<72x8xbf16>, vector<64x8xf32> -> vector<64x8xf32>
    %c0_82 = arith.constant 0 : index
    %c0_83 = arith.constant 0 : index
    %69 = vector.load %arg6[%c0_82, %c0_83] : memref<1x8xf32, #tpu.memory_space<vmem>>, vector<1x8xf32>
    %70 = vector.broadcast %69 : vector<1x8xf32> to vector<64x8xf32>
    %71 = arith.mulf %68, %70 : vector<64x8xf32>
    %c0_84 = arith.constant 0 : index
    %c0_85 = arith.constant 0 : index
    %72 = vector.load %arg7[%c0_84, %c0_85] : memref<1x8xf32, #tpu.memory_space<vmem>>, vector<1x8xf32>
    %73 = vector.broadcast %72 : vector<1x8xf32> to vector<64x8xf32>
    %74 = arith.addf %71, %73 : vector<64x8xf32>
    %cst_86 = arith.constant 0.000000e+00 : f32
    %75 = vector.broadcast %cst_86 : f32 to vector<64x8xf32>
    %76 = arith.maximumf %74, %75 : vector<64x8xf32>
    %77 = tpu.transpose %76, [1, 0] : vector<64x8xf32> -> vector<8x64xf32>
    %c0_87 = arith.constant 0 : index
    %c0_88 = arith.constant 0 : index
    %c0_89 = arith.constant 0 : index
    %78 = vector.load %arg8[%c0_87, %c0_88, %c0_89] : memref<1x8x64xf32, #tpu.memory_space<vmem>>, vector<1x8x64xf32>
    %79 = vector.shape_cast %78 : vector<1x8x64xf32> to vector<8x64xf32>
    %80 = vector.shape_cast %77 : vector<8x64xf32> to vector<1x8x64xf32>
    tpu.vector_store %arg8[%c0_87, %c0_88, %c0_89], %80 {strides = array<i32>} : memref<1x8x64xf32, #tpu.memory_space<vmem>>, vector<1x8x64xf32>,
    return
  }
  func.func @transform_0(%arg0: i32) -> (i32, i32, i32, i32, i32) {
    %c0_i32 = arith.constant 0 : i32
    %c0_i32_0 = arith.constant 0 : i32
    %c0_i32_1 = arith.constant 0 : i32
    %c0_i32_2 = arith.constant 0 : i32
    %c0_i32_3 = arith.constant 0 : i32
    return %arg0, %c0_i32, %c0_i32_0, %c0_i32_1, %c0_i32_2 : i32, i32, i32, i32, i32
  }
  func.func @transform_1(%arg0: i32) -> (i32, i32) {
    %c0_i32 = arith.constant 0 : i32
    %c0_i32_0 = arith.constant 0 : i32
    %c0_i32_1 = arith.constant 0 : i32
    return %c0_i32, %c0_i32_0 : i32, i32
  }
  func.func @transform_2(%arg0: i32) -> (i32, i32) {
    %c0_i32 = arith.constant 0 : i32
    %c0_i32_0 = arith.constant 0 : i32
    %c0_i32_1 = arith.constant 0 : i32
    return %c0_i32, %c0_i32_0 : i32, i32
  }
  func.func @transform_3(%arg0: i32) -> (i32, i32) {
    %c0_i32 = arith.constant 0 : i32
    %c0_i32_0 = arith.constant 0 : i32
    %c0_i32_1 = arith.constant 0 : i32
    return %c0_i32, %c0_i32_0 : i32, i32
  }
  func.func @transform_4(%arg0: i32) -> (i32, i32) {
    %c0_i32 = arith.constant 0 : i32
    %c0_i32_0 = arith.constant 0 : i32
    %c0_i32_1 = arith.constant 0 : i32
    return %c0_i32, %c0_i32_0 : i32, i32
  }
  func.func @transform_5(%arg0: i32) -> (i32, i32) {
    %c0_i32 = arith.constant 0 : i32
    %c0_i32_0 = arith.constant 0 : i32
    %c0_i32_1 = arith.constant 0 : i32
    return %c0_i32, %c0_i32_0 : i32, i32
  }
  func.func @transform_6(%arg0: i32) -> (i32, i32) {
    %c0_i32 = arith.constant 0 : i32
    %c0_i32_0 = arith.constant 0 : i32
    %c0_i32_1 = arith.constant 0 : i32
    return %c0_i32, %c0_i32_0 : i32, i32
  }
  func.func @transform_7(%arg0: i32) -> (i32, i32, i32) {
    %c0_i32 = arith.constant 0 : i32
    %c0_i32_0 = arith.constant 0 : i32
    %c0_i32_1 = arith.constant 0 : i32
    return %arg0, %c0_i32, %c0_i32_0 : i32, i32, i32
  }
}

</mosaic_0001>

<llo_original>
// kernel: down_forward.1
$region0: #{down_forward.1}
  #allocation0 [shape = 'u32[]', space=smem, size = 0x4, offset = 0x4, fixed_abs, tag = 'smem constant byte address 0x4 - core index']
  #allocation1 [shape = 'u32[144,128]{1,0:T(1,128)}', space=vmem, size = 0x12000, scoped, tag = 'internal scratch']
  #allocation2 [shape = 'f32[8,8,36]{2,1,0:T(8,128)}', space=vmem, size = 0x8000, scoped, tag = 'scratch operand']
  #allocation3 [shape = 'f32[8,8,72]{2,1,0:T(8,128)}', space=vmem, size = 0x8000, scoped, tag = 'scratch operand']
  %s0 = inlined_call_operand.vmem [shape: bf16[2,4,8,8,4], index: 0, kind: input, shape index: {}]
  %s1 = inlined_call_operand.vmem [shape: bf16[36,8], index: 1, kind: input, shape index: {}]
  %s2 = inlined_call_operand.vmem [shape: f32[1,8], index: 2, kind: input, shape index: {}]
  %s3 = inlined_call_operand.vmem [shape: f32[1,8], index: 3, kind: input, shape index: {}]
  %s4 = inlined_call_operand.vmem [shape: bf16[72,8], index: 4, kind: input, shape index: {}]
  %s5 = inlined_call_operand.vmem [shape: f32[1,8], index: 5, kind: input, shape index: {}]
  %s6 = inlined_call_operand.vmem [shape: f32[1,8], index: 6, kind: input, shape index: {}]
  %s7 = inlined_call_operand.vmem [shape: f32[2,8,64], index: 7, kind: output, shape index: {}]
  %s8 = sld [smem:[#allocation0]]
  $region61: #{down_forward.1} parent=0
    _
  %s10 = ssub.s32 1, %s8
  %s11 = scalar_select 0, %s10, %s8
  loop: start=0, step=1, limit=4
  $region2: #{down_forward.1} parent=0 // loop_pre_header
    _
  $region3: #{down_forward.1} parent=0 // loop_header
    %s13 = sphi 0, %s17
    %p14 = scmp.ge.s32.totalorder %s13, 4
    %s23 = sphi 0, %s25
    %s26 = sphi 0, %s23
    %s27 = sphi 0, %s26
    %s43 = sphi 0, %s27
    %s47 = sphi 0, %s47
    %s49 = sphi 0, %s47
    %s50 = sphi 0, %s49
    %s64 = sphi 0, %s50
    %s68 = sphi 0, %s68
    %s70 = sphi 0, %s68
    %s71 = sphi 0, %s70
    %s85 = sphi 0, %s71
    %s89 = sphi 0, %s89
    %s91 = sphi 0, %s89
    %s92 = sphi 0, %s91
    %s106 = sphi 0, %s92
    %s110 = sphi 0, %s110
    %s112 = sphi 0, %s110
    %s113 = sphi 0, %s112
    %s127 = sphi 0, %s113
    %s131 = sphi 0, %s131
    %s133 = sphi 0, %s131
    %s134 = sphi 0, %s133
    %s148 = sphi 0, %s134
    %s152 = sphi 0, %s152
    %s154 = sphi 0, %s152
    %s155 = sphi 0, %s154
    %s169 = sphi 0, %s155
    %s175 = sphi 0, %s177
    %s178 = sphi 0, %s175
    %s179 = sphi 0, %s178
    %s195 = sphi 0, %s179
  $region4: #{down_forward.1} parent=0 // loop_header_branch
    %16 = sbr.rel (%p14) target = $region8
  $region5: #{down_forward.1} parent=0 // loop_body
    %s18 = ssub.s32 %s13, 1
    %s19 = ssub.s32 %s13, 2
    %s20 = sadd.s32 %s13, 1
    %s21 = ssub.s32 %s13, %s20
    %p22 = scmp.eq.s32.totalorder %s21, 0
    %s24 = sadd.s32 %s23, 1
    %s25 = scalar_select %p22, %s23, %s24
    %p28 = pneg %p22
    %p29 = scmp.eq.s32.totalorder %s13, 1
    %p30 = por %p28, %p29
    %p31 = scmp.ne.s32.totalorder %s23, %s26
    %p32 = scmp.eq.s32.totalorder %s13, 0
    %p33 = por %p31, %p32
    %p34 = scmp.ne.s32.totalorder %s23, %s26
    %p35 = scmp.eq.s32.totalorder %s18, 1
    %p36 = por %p34, %p35
    %p37 = scmp.ne.s32.totalorder %s26, %s27
    %p38 = scmp.eq.s32.totalorder %s18, 0
    %p39 = por %p37, %p38
    %p40 = scmp.ne.s32.totalorder %s26, %s27
    %p41 = scmp.eq.s32.totalorder %s19, 1
    %p42 = por %p40, %p41
    %p44 = scmp.ne.s32.totalorder %s27, %s43
    %p45 = scmp.eq.s32.totalorder %s19, 0
    %p46 = por %p44, %p45
    %s48 = sadd.s32 %s47, 1
    %p51 = scmp.eq.s32.totalorder %s13, 1
    %p52 = scmp.ne.s32.totalorder %s47, %s49
    %p53 = scmp.eq.s32.totalorder %s13, 0
    %p54 = por %p52, %p53
    %p55 = scmp.ne.s32.totalorder %s47, %s49
    %p56 = scmp.eq.s32.totalorder %s18, 1
    %p57 = por %p55, %p56
    %p58 = scmp.ne.s32.totalorder %s49, %s50
    %p59 = scmp.eq.s32.totalorder %s18, 0
    %p60 = por %p58, %p59
    %p61 = scmp.ne.s32.totalorder %s49, %s50
    %p62 = scmp.eq.s32.totalorder %s19, 1
    %p63 = por %p61, %p62
    %p65 = scmp.ne.s32.totalorder %s50, %s64
    %p66 = scmp.eq.s32.totalorder %s19, 0
    %p67 = por %p65, %p66
    %s69 = sadd.s32 %s68, 1
    %p72 = scmp.eq.s32.totalorder %s13, 1
    %p73 = scmp.ne.s32.totalorder %s68, %s70
    %p74 = scmp.eq.s32.totalorder %s13, 0
    %p75 = por %p73, %p74
    %p76 = scmp.ne.s32.totalorder %s68, %s70
    %p77 = scmp.eq.s32.totalorder %s18, 1
    %p78 = por %p76, %p77
    %p79 = scmp.ne.s32.totalorder %s70, %s71
    %p80 = scmp.eq.s32.totalorder %s18, 0
    %p81 = por %p79, %p80
    %p82 = scmp.ne.s32.totalorder %s70, %s71
    %p83 = scmp.eq.s32.totalorder %s19, 1
    %p84 = por %p82, %p83
    %p86 = scmp.ne.s32.totalorder %s71, %s85
    %p87 = scmp.eq.s32.totalorder %s19, 0
    %p88 = por %p86, %p87
    %s90 = sadd.s32 %s89, 1
    %p93 = scmp.eq.s32.totalorder %s13, 1
    %p94 = scmp.ne.s32.totalorder %s89, %s91
    %p95 = scmp.eq.s32.totalorder %s13, 0
    %p96 = por %p94, %p95
    %p97 = scmp.ne.s32.totalorder %s89, %s91
    %p98 = scmp.eq.s32.totalorder %s18, 1
    %p99 = por %p97, %p98
    %p100 = scmp.ne.s32.totalorder %s91, %s92
    %p101 = scmp.eq.s32.totalorder %s18, 0
    %p102 = por %p100, %p101
    %p103 = scmp.ne.s32.totalorder %s91, %s92
    %p104 = scmp.eq.s32.totalorder %s19, 1
    %p105 = por %p103, %p104
    %p107 = scmp.ne.s32.totalorder %s92, %s106
    %p108 = scmp.eq.s32.totalorder %s19, 0
    %p109 = por %p107, %p108
    %s111 = sadd.s32 %s110, 1
    %p114 = scmp.eq.s32.totalorder %s13, 1
    %p115 = scmp.ne.s32.totalorder %s110, %s112
    %p116 = scmp.eq.s32.totalorder %s13, 0
    %p117 = por %p115, %p116
    %p118 = scmp.ne.s32.totalorder %s110, %s112
    %p119 = scmp.eq.s32.totalorder %s18, 1
    %p120 = por %p118, %p119
    %p121 = scmp.ne.s32.totalorder %s112, %s113
    %p122 = scmp.eq.s32.totalorder %s18, 0
    %p123 = por %p121, %p122
    %p124 = scmp.ne.s32.totalorder %s112, %s113
    %p125 = scmp.eq.s32.totalorder %s19, 1
    %p126 = por %p124, %p125
    %p128 = scmp.ne.s32.totalorder %s113, %s127
    %p129 = scmp.eq.s32.totalorder %s19, 0
    %p130 = por %p128, %p129
    %s132 = sadd.s32 %s131, 1
    %p135 = scmp.eq.s32.totalorder %s13, 1
    %p136 = scmp.ne.s32.totalorder %s131, %s133
    %p137 = scmp.eq.s32.totalorder %s13, 0
    %p138 = por %p136, %p137
    %p139 = scmp.ne.s32.totalorder %s131, %s133
    %p140 = scmp.eq.s32.totalorder %s18, 1
    %p141 = por %p139, %p140
    %p142 = scmp.ne.s32.totalorder %s133, %s134
    %p143 = scmp.eq.s32.totalorder %s18, 0
    %p144 = por %p142, %p143
    %p145 = scmp.ne.s32.totalorder %s133, %s134
    %p146 = scmp.eq.s32.totalorder %s19, 1
    %p147 = por %p145, %p146
    %p149 = scmp.ne.s32.totalorder %s134, %s148
    %p150 = scmp.eq.s32.totalorder %s19, 0
    %p151 = por %p149, %p150
    %s153 = sadd.s32 %s152, 1
    %p156 = scmp.eq.s32.totalorder %s13, 1
    %p157 = scmp.ne.s32.totalorder %s152, %s154
    %p158 = scmp.eq.s32.totalorder %s13, 0
    %p159 = por %p157, %p158
    %p160 = scmp.ne.s32.totalorder %s152, %s154
    %p161 = scmp.eq.s32.totalorder %s18, 1
    %p162 = por %p160, %p161
    %p163 = scmp.ne.s32.totalorder %s154, %s155
    %p164 = scmp.eq.s32.totalorder %s18, 0
    %p165 = por %p163, %p164
    %p166 = scmp.ne.s32.totalorder %s154, %s155
    %p167 = scmp.eq.s32.totalorder %s19, 1
    %p168 = por %p166, %p167
    %p170 = scmp.ne.s32.totalorder %s155, %s169
    %p171 = scmp.eq.s32.totalorder %s19, 0
    %p172 = por %p170, %p171
    %s173 = ssub.s32 %s13, %s20
    %p174 = scmp.eq.s32.totalorder %s173, 0
    %s176 = sadd.s32 %s175, 1
    %s177 = scalar_select %p174, %s175, %s176
    %p180 = pneg %p174
    %p181 = scmp.eq.s32.totalorder %s13, 1
    %p182 = por %p180, %p181
    %p183 = scmp.ne.s32.totalorder %s175, %s178
    %p184 = scmp.eq.s32.totalorder %s13, 0
    %p185 = por %p183, %p184
    %p186 = scmp.ne.s32.totalorder %s175, %s178
    %p187 = scmp.eq.s32.totalorder %s18, 1
    %p188 = por %p186, %p187
    %p189 = scmp.ne.s32.totalorder %s178, %s179
    %p190 = scmp.eq.s32.totalorder %s18, 0
    %p191 = por %p189, %p190
    %p192 = scmp.ne.s32.totalorder %s178, %s179
    %p193 = scmp.eq.s32.totalorder %s19, 1
    %p194 = por %p192, %p193
    %p196 = scmp.ne.s32.totalorder %s179, %s195
    %p197 = scmp.eq.s32.totalorder %s19, 0
    %p198 = por %p196, %p197
    %p199 = scmp.le.s32.totalorder 1, %s13
    %p200 = scmp.lt.s32.totalorder %s13, 3
    %p201 = pnand %p199, %p200
    %p202 = pneg %p201
    // Predicated region
    $region9: #{down_forward.1} parent=5 // pred_check
      _
    $region10: #{down_forward.1} parent=5 // pred_check_branch
      %204 = sbr.rel (%p201) target = $region12
    $region11: #{down_forward.1} parent=5 // pred_region
      %s205 = ssub.s32 %s13, 1
      // Predicated region
      $region13: #{down_forward.1} parent=11 // pred_check
        %p206 = pneg %p60
      $region14: #{down_forward.1} parent=11 // pred_check_branch
        %208 = sbr.rel (%p206) target = $region16
      $region15: #{down_forward.1} parent=11 // pred_region
        _
      $region16: #{down_forward.1} parent=11 // pred_fallthru
        _
      // Predicated region
      $region17: #{down_forward.1} parent=11 // pred_check
        %p209 = pneg %p81
      $region18: #{down_forward.1} parent=11 // pred_check_branch
        %211 = sbr.rel (%p209) target = $region20
      $region19: #{down_forward.1} parent=11 // pred_region
        _
      $region20: #{down_forward.1} parent=11 // pred_fallthru
        _
      // Predicated region
      $region21: #{down_forward.1} parent=11 // pred_check
        %p212 = pneg %p102
      $region22: #{down_forward.1} parent=11 // pred_check_branch
        %214 = sbr.rel (%p212) target = $region24
      $region23: #{down_forward.1} parent=11 // pred_region
        _
      $region24: #{down_forward.1} parent=11 // pred_fallthru
        _
      // Predicated region
      $region25: #{down_forward.1} parent=11 // pred_check
        %p215 = pneg %p123
      $region26: #{down_forward.1} parent=11 // pred_check_branch
        %217 = sbr.rel (%p215) target = $region28
      $region27: #{down_forward.1} parent=11 // pred_region
        _
      $region28: #{down_forward.1} parent=11 // pred_fallthru
        _
      // Predicated region
      $region29: #{down_forward.1} parent=11 // pred_check
        %p218 = pneg %p144
      $region30: #{down_forward.1} parent=11 // pred_check_branch
        %220 = sbr.rel (%p218) target = $region32
      $region31: #{down_forward.1} parent=11 // pred_region
        _
      $region32: #{down_forward.1} parent=11 // pred_fallthru
        _
      // Predicated region
      $region33: #{down_forward.1} parent=11 // pred_check
        %p221 = pneg %p165
      $region34: #{down_forward.1} parent=11 // pred_check_branch
        %223 = sbr.rel (%p221) target = $region36
      $region35: #{down_forward.1} parent=11 // pred_region
        _
      $region36: #{down_forward.1} parent=11 // pred_fallthru
        _
    $region12: #{down_forward.1} parent=5 // pred_fallthru
      _
    %p224 = scmp.lt.s32.totalorder %s13, 2
    // Predicated region
    $region37: #{down_forward.1} parent=5 // pred_check
      %p225 = pneg %p224
    $region38: #{down_forward.1} parent=5 // pred_check_branch
      %227 = sbr.rel (%p225) target = $region40
    $region39: #{down_forward.1} parent=5 // pred_region
      // Predicated region
      $region41: #{down_forward.1} parent=39 // pred_check
        %p228 = pneg %p33
      $region42: #{down_forward.1} parent=39 // pred_check_branch
        %230 = sbr.rel (%p228) target = $region44
      $region43: #{down_forward.1} parent=39 // pred_region
        %p231 = scmp.lt.s32.totalorder %s13, 1
        %s232 = scalar_select %p231, %s13, 1
        %s233 = smul.addr %s232, 32
        %s234 = smul.addr %s233, 4
        %s235 = scalar_lea.vmem %s0, %s234
      $region44: #{down_forward.1} parent=39 // pred_fallthru
        _
    $region40: #{down_forward.1} parent=5 // pred_fallthru
      _
    %p236 = scmp.le.s32.totalorder 1, %s13
    %p237 = scmp.lt.s32.totalorder %s13, 3
    %p238 = pnand %p236, %p237
    %p239 = pneg %p238
    // Predicated region
    $region45: #{down_forward.1} parent=5 // pred_check
      _
    $region46: #{down_forward.1} parent=5 // pred_check_branch
      %241 = sbr.rel (%p238) target = $region48
    $region47: #{down_forward.1} parent=5 // pred_region
      %s242 = ssub.s32 %s13, 1
      %p243 = scmp.lt.s32.totalorder %s18, 1
      %s244 = scalar_select %p243, %s18, 1
      %s245 = smul.addr %s244, 32
      %s246 = smul.addr %s245, 4
      %s247 = scalar_lea.vmem %s0, %s246
      %p248 = pneg %p39
      %p249 = pneg %p36
      %p250 = pneg %p60
      %p251 = pneg %p57
      %p252 = pneg %p81
      %p253 = pneg %p78
      %p254 = pneg %p102
      %p255 = pneg %p99
      %p256 = pneg %p123
      %p257 = pneg %p120
      %p258 = pneg %p144
      %p259 = pneg %p141
      %p260 = pneg %p165
      %p261 = pneg %p162
      %p262 = pneg %p191
      %p263 = pneg %p188
      %p264 = scmp.lt.s32.totalorder %s18, 1
      %s265 = scalar_select %p264, %s18, 1
      %s266 = smul.addr %s265, 8
      %s267 = scalar_lea.vmem %s7, %s266
      %p268 = scmp.lt.s32.totalorder %s18, 1
      %s269 = scalar_select %p268, %s18, 1
      %s270 = smul.addr %s269, 32
      %s271 = smul.addr %s270, 4
      %s272 = scalar_lea.vmem %s0, %s271
      %p273 = scmp.lt.s32.totalorder %s18, 1
      %s274 = scalar_select %p273, %s18, 1
      %s275 = smul.addr %s274, 8
      %s276 = scalar_lea.vmem %s7, %s275
      %v278 = vld [vmem:[%s272] sm:$0xf]
      %v279 = vld [vmem:[%s272 + $0x4] sm:$0xf]
      %v280 = vld [vmem:[%s272 + $0x8] sm:$0xf]
      %v281 = vld [vmem:[%s272 + $0xc] sm:$0xf]
      %v282 = vld [vmem:[%s272 + $0x10] sm:$0xf]
      %v283 = vld [vmem:[%s272 + $0x14] sm:$0xf]
      %v284 = vld [vmem:[%s272 + $0x18] sm:$0xf]
      %v285 = vld [vmem:[%s272 + $0x1c] sm:$0xf]
      %s286 = scalar_lea.vmem %s272, 32
      %v287 = vld [vmem:[%s286] sm:$0xf]
      %v288 = vld [vmem:[%s286 + $0x4] sm:$0xf]
      %v289 = vld [vmem:[%s286 + $0x8] sm:$0xf]
      %v290 = vld [vmem:[%s286 + $0xc] sm:$0xf]
      %v291 = vld [vmem:[%s286 + $0x10] sm:$0xf]
      %v292 = vld [vmem:[%s286 + $0x14] sm:$0xf]
      %v293 = vld [vmem:[%s286 + $0x18] sm:$0xf]
      %v294 = vld [vmem:[%s286 + $0x1c] sm:$0xf]
      %v295 = vmax.bf16 %v278, %v287
      %v296 = vmax.bf16 %v279, %v288
      %v297 = vmax.bf16 %v280, %v289
      %v298 = vmax.bf16 %v281, %v290
      %v299 = vmax.bf16 %v282, %v291
      %v300 = vmax.bf16 %v283, %v292
      %v301 = vmax.bf16 %v284, %v293
      %v302 = vmax.bf16 %v285, %v294
      %s303 = scalar_lea.vmem %s272, 64
      %v304 = vld [vmem:[%s303] sm:$0xf]
      %v305 = vld [vmem:[%s303 + $0x4] sm:$0xf]
      %v306 = vld [vmem:[%s303 + $0x8] sm:$0xf]
      %v307 = vld [vmem:[%s303 + $0xc] sm:$0xf]
      %v308 = vld [vmem:[%s303 + $0x10] sm:$0xf]
      %v309 = vld [vmem:[%s303 + $0x14] sm:$0xf]
      %v310 = vld [vmem:[%s303 + $0x18] sm:$0xf]
      %v311 = vld [vmem:[%s303 + $0x1c] sm:$0xf]
      %s312 = scalar_lea.vmem %s272, 96
      %v313 = vld [vmem:[%s312] sm:$0xf]
      %v314 = vld [vmem:[%s312 + $0x4] sm:$0xf]
      %v315 = vld [vmem:[%s312 + $0x8] sm:$0xf]
      %v316 = vld [vmem:[%s312 + $0xc] sm:$0xf]
      %v317 = vld [vmem:[%s312 + $0x10] sm:$0xf]
      %v318 = vld [vmem:[%s312 + $0x14] sm:$0xf]
      %v319 = vld [vmem:[%s312 + $0x18] sm:$0xf]
      %v320 = vld [vmem:[%s312 + $0x1c] sm:$0xf]
      %v321 = vmax.bf16 %v304, %v313
      %v322 = vmax.bf16 %v305, %v314
      %v323 = vmax.bf16 %v306, %v315
      %v324 = vmax.bf16 %v307, %v316
      %v325 = vmax.bf16 %v308, %v317
      %v326 = vmax.bf16 %v309, %v318
      %v327 = vmax.bf16 %v310, %v319
      %v328 = vmax.bf16 %v311, %v320
      %v329 = vmax.bf16 %v295, %v321
      %v330 = vmax.bf16 %v296, %v322
      %v331 = vmax.bf16 %v297, %v323
      %v332 = vmax.bf16 %v298, %v324
      %v333 = vmax.bf16 %v299, %v325
      %v334 = vmax.bf16 %v300, %v326
      %v335 = vmax.bf16 %v301, %v327
      %v336 = vmax.bf16 %v302, %v328
      %v337 = vunpack.c.l.bf16 %v329
      %v338 = vunpack.c.l.bf16 %v330
      %v339 = vunpack.c.l.bf16 %v331
      %v340 = vunpack.c.l.bf16 %v332
      %v341 = vunpack.c.l.bf16 %v333
      %v342 = vunpack.c.l.bf16 %v334
      %v343 = vunpack.c.l.bf16 %v335
      %v344 = vunpack.c.l.bf16 %v336
      %vm345 = vcmask 293888
      %346 = vst.msk [vmem:[#allocation2] sm:$0xff] %vm345, 0.0
      %347 = vst.msk [vmem:[#allocation2 + $0x8] sm:$0xff] %vm345, 0.0
      %348 = vst.msk [vmem:[#allocation2 + $0x10] sm:$0xff] %vm345, 0.0
      %349 = vst.msk [vmem:[#allocation2 + $0x18] sm:$0xff] %vm345, 0.0
      %350 = vst.msk [vmem:[#allocation2 + $0x20] sm:$0xff] %vm345, 0.0
      %351 = vst.msk [vmem:[#allocation2 + $0x28] sm:$0xff] %vm345, 0.0
      %352 = vst.msk [vmem:[#allocation2 + $0x30] sm:$0xff] %vm345, 0.0
      %353 = vst.msk [vmem:[#allocation2 + $0x38] sm:$0xff] %vm345, 0.0
      %s354 = scalar_lea.vmem [#allocation2], 8
      %vm355 = vcmask 30720
      %356 = vst.msk [vmem:[%s354 + $0x1] sm:$0x7f] %vm355, %v337
      %357 = vst.msk [vmem:[%s354 + $0x9] sm:$0x7f] %vm355, %v338
      %358 = vst.msk [vmem:[%s354 + $0x11] sm:$0x7f] %vm355, %v339
      %359 = vst.msk [vmem:[%s354 + $0x19] sm:$0x7f] %vm355, %v340
      %360 = vst.msk [vmem:[%s354 + $0x21] sm:$0x7f] %vm355, %v341
      %361 = vst.msk [vmem:[%s354 + $0x29] sm:$0x7f] %vm355, %v342
      %362 = vst.msk [vmem:[%s354 + $0x31] sm:$0x7f] %vm355, %v343
      %370 = vrot.lane.b32.xlu0 %v337, 4
      %v371 = vpop.permute.xlu0 %370
      %372 = vrot.lane.b32.xlu0 %v338, 4
      %v373 = vpop.permute.xlu0 %372
      %374 = vrot.lane.b32.xlu0 %v339, 4
      %v375 = vpop.permute.xlu0 %374
      %376 = vrot.lane.b32.xlu0 %v340, 4
      %v377 = vpop.permute.xlu0 %376
      %378 = vrot.lane.b32.xlu0 %v341, 4
      %v379 = vpop.permute.xlu0 %378
      %380 = vrot.lane.b32.xlu0 %v342, 4
      %v381 = vpop.permute.xlu0 %380
      %382 = vrot.lane.b32.xlu0 %v343, 4
      %v383 = vpop.permute.xlu0 %382
      %vm391 = vcmask 64544
      %392 = vst.msk [vmem:[%s354] sm:$0xff] %vm391, %v371
      %393 = vst.msk [vmem:[%s354 + $0x8] sm:$0xff] %vm391, %v373
      %394 = vst.msk [vmem:[%s354 + $0x10] sm:$0xff] %vm391, %v375
      %395 = vst.msk [vmem:[%s354 + $0x18] sm:$0xff] %vm391, %v377
      %396 = vst.msk [vmem:[%s354 + $0x20] sm:$0xff] %vm391, %v379
      %397 = vst.msk [vmem:[%s354 + $0x28] sm:$0xff] %vm391, %v381
      %398 = vst.msk [vmem:[%s354 + $0x30] sm:$0xff] %vm391, %v383
      %399 = vrot.lane.b32.xlu0 %v337, 8
      %v400 = vpop.permute.xlu0 %399
      %401 = vrot.lane.b32.xlu0 %v338, 8
      %v402 = vpop.permute.xlu0 %401
      %403 = vrot.lane.b32.xlu0 %v339, 8
      %v404 = vpop.permute.xlu0 %403
      %405 = vrot.lane.b32.xlu0 %v340, 8
      %v406 = vpop.permute.xlu0 %405
      %407 = vrot.lane.b32.xlu0 %v341, 8
      %v408 = vpop.permute.xlu0 %407
      %409 = vrot.lane.b32.xlu0 %v342, 8
      %v410 = vpop.permute.xlu0 %409
      %411 = vrot.lane.b32.xlu0 %v343, 8
      %v412 = vpop.permute.xlu0 %411
      %vm420 = vcmask 97345
      %421 = vst.msk [vmem:[%s354 - $0x1] sm:$0xfe] %vm420, %v400
      %422 = vst.msk [vmem:[%s354 + $0x7] sm:$0xfe] %vm420, %v402
      %423 = vst.msk [vmem:[%s354 + $0xf] sm:$0xfe] %vm420, %v404
      %424 = vst.msk [vmem:[%s354 + $0x17] sm:$0xfe] %vm420, %v406
      %425 = vst.msk [vmem:[%s354 + $0x1f] sm:$0xfe] %vm420, %v408
      %426 = vst.msk [vmem:[%s354 + $0x27] sm:$0xfe] %vm420, %v410
      %427 = vst.msk [vmem:[%s354 + $0x2f] sm:$0xfe] %vm420, %v412
      %429 = vrot.lane.b32.xlu0 %v337, 12
      %v430 = vpop.permute.xlu0 %429
      %431 = vrot.lane.b32.xlu0 %v338, 12
      %v432 = vpop.permute.xlu0 %431
      %433 = vrot.lane.b32.xlu0 %v339, 12
      %v434 = vpop.permute.xlu0 %433
      %435 = vrot.lane.b32.xlu0 %v340, 12
      %v436 = vpop.permute.xlu0 %435
      %437 = vrot.lane.b32.xlu0 %v341, 12
      %v438 = vpop.permute.xlu0 %437
      %439 = vrot.lane.b32.xlu0 %v342, 12
      %v440 = vpop.permute.xlu0 %439
      %441 = vrot.lane.b32.xlu0 %v343, 12
      %v442 = vpop.permute.xlu0 %441
      %443 = vrot.lane.b32.xlu0 %v344, 12
      %v444 = vpop.permute.xlu0 %443
      %vm453 = vcmask 129120
      %454 = vst.msk [vmem:[#allocation2 + $0x1] sm:$0x7f] %vm453, %v430
      %455 = vst.msk [vmem:[#allocation2 + $0x9] sm:$0x7f] %vm453, %v432
      %456 = vst.msk [vmem:[#allocation2 + $0x11] sm:$0x7f] %vm453, %v434
      %457 = vst.msk [vmem:[#allocation2 + $0x19] sm:$0x7f] %vm453, %v436
      %458 = vst.msk [vmem:[#allocation2 + $0x21] sm:$0x7f] %vm453, %v438
      %459 = vst.msk [vmem:[#allocation2 + $0x29] sm:$0x7f] %vm453, %v440
      %460 = vst.msk [vmem:[#allocation2 + $0x31] sm:$0x7f] %vm453, %v442
      %461 = vst.msk [vmem:[#allocation2 + $0x39] sm:$0x7f] %vm453, %v444
      %462 = vrot.lane.b32.xlu0 %v337, 16
      %v463 = vpop.permute.xlu0 %462
      %464 = vrot.lane.b32.xlu0 %v338, 16
      %v465 = vpop.permute.xlu0 %464
      %466 = vrot.lane.b32.xlu0 %v339, 16
      %v467 = vpop.permute.xlu0 %466
      %468 = vrot.lane.b32.xlu0 %v340, 16
      %v469 = vpop.permute.xlu0 %468
      %470 = vrot.lane.b32.xlu0 %v341, 16
      %v471 = vpop.permute.xlu0 %470
      %472 = vrot.lane.b32.xlu0 %v342, 16
      %v473 = vpop.permute.xlu0 %472
      %474 = vrot.lane.b32.xlu0 %v343, 16
      %v475 = vpop.permute.xlu0 %474
      %476 = vrot.lane.b32.xlu0 %v344, 16
      %v477 = vpop.permute.xlu0 %476
      %vm486 = vcmask 162944
      %487 = vst.msk [vmem:[#allocation2] sm:$0xff] %vm486, %v463
      %488 = vst.msk [vmem:[#allocation2 + $0x8] sm:$0xff] %vm486, %v465
      %489 = vst.msk [vmem:[#allocation2 + $0x10] sm:$0xff] %vm486, %v467
      %490 = vst.msk [vmem:[#allocation2 + $0x18] sm:$0xff] %vm486, %v469
      %491 = vst.msk [vmem:[#allocation2 + $0x20] sm:$0xff] %vm486, %v471
      %492 = vst.msk [vmem:[#allocation2 + $0x28] sm:$0xff] %vm486, %v473
      %493 = vst.msk [vmem:[#allocation2 + $0x30] sm:$0xff] %vm486, %v475
      %494 = vst.msk [vmem:[#allocation2 + $0x38] sm:$0xff] %vm486, %v477
      %495 = vrot.lane.b32.xlu0 %v337, 20
      %v496 = vpop.permute.xlu0 %495
      %497 = vrot.lane.b32.xlu0 %v338, 20
      %v498 = vpop.permute.xlu0 %497
      %499 = vrot.lane.b32.xlu0 %v339, 20
      %v500 = vpop.permute.xlu0 %499
      %501 = vrot.lane.b32.xlu0 %v340, 20
      %v502 = vpop.permute.xlu0 %501
      %503 = vrot.lane.b32.xlu0 %v341, 20
      %v504 = vpop.permute.xlu0 %503
      %505 = vrot.lane.b32.xlu0 %v342, 20
      %v506 = vpop.permute.xlu0 %505
      %507 = vrot.lane.b32.xlu0 %v343, 20
      %v508 = vpop.permute.xlu0 %507
      %509 = vrot.lane.b32.xlu0 %v344, 20
      %v510 = vpop.permute.xlu0 %509
      %vm519 = vcmask 195745
      %520 = vst.msk [vmem:[#allocation2 - $0x1] sm:$0xfe] %vm519, %v496
      %521 = vst.msk [vmem:[#allocation2 + $0x7] sm:$0xfe] %vm519, %v498
      %522 = vst.msk [vmem:[#allocation2 + $0xf] sm:$0xfe] %vm519, %v500
      %523 = vst.msk [vmem:[#allocation2 + $0x17] sm:$0xfe] %vm519, %v502
      %524 = vst.msk [vmem:[#allocation2 + $0x1f] sm:$0xfe] %vm519, %v504
      %525 = vst.msk [vmem:[#allocation2 + $0x27] sm:$0xfe] %vm519, %v506
      %526 = vst.msk [vmem:[#allocation2 + $0x2f] sm:$0xfe] %vm519, %v508
      %527 = vst.msk [vmem:[#allocation2 + $0x37] sm:$0xfe] %vm519, %v510
      %528 = vrot.lane.b32.xlu0 %v338, 24
      %v529 = vpop.permute.xlu0 %528
      %530 = vrot.lane.b32.xlu0 %v339, 24
      %v531 = vpop.permute.xlu0 %530
      %532 = vrot.lane.b32.xlu0 %v340, 24
      %v533 = vpop.permute.xlu0 %532
      %534 = vrot.lane.b32.xlu0 %v341, 24
      %v535 = vpop.permute.xlu0 %534
      %536 = vrot.lane.b32.xlu0 %v342, 24
      %v537 = vpop.permute.xlu0 %536
      %538 = vrot.lane.b32.xlu0 %v343, 24
      %v539 = vpop.permute.xlu0 %538
      %540 = vrot.lane.b32.xlu0 %v344, 24
      %v541 = vpop.permute.xlu0 %540
      %vm549 = vcmask 227520
      %550 = vst.msk [vmem:[#allocation2 + $0x1] sm:$0x7f] %vm549, %v529
      %551 = vst.msk [vmem:[#allocation2 + $0x9] sm:$0x7f] %vm549, %v531
      %552 = vst.msk [vmem:[#allocation2 + $0x11] sm:$0x7f] %vm549, %v533
      %553 = vst.msk [vmem:[#allocation2 + $0x19] sm:$0x7f] %vm549, %v535
      %554 = vst.msk [vmem:[#allocation2 + $0x21] sm:$0x7f] %vm549, %v537
      %555 = vst.msk [vmem:[#allocation2 + $0x29] sm:$0x7f] %vm549, %v539
      %556 = vst.msk [vmem:[#allocation2 + $0x31] sm:$0x7f] %vm549, %v541
      %557 = vrot.lane.b32.xlu0 %v338, 28
      %v558 = vpop.permute.xlu0 %557
      %559 = vrot.lane.b32.xlu0 %v339, 28
      %v560 = vpop.permute.xlu0 %559
      %561 = vrot.lane.b32.xlu0 %v340, 28
      %v562 = vpop.permute.xlu0 %561
      %563 = vrot.lane.b32.xlu0 %v341, 28
      %v564 = vpop.permute.xlu0 %563
      %565 = vrot.lane.b32.xlu0 %v342, 28
      %v566 = vpop.permute.xlu0 %565
      %567 = vrot.lane.b32.xlu0 %v343, 28
      %v568 = vpop.permute.xlu0 %567
      %569 = vrot.lane.b32.xlu0 %v344, 28
      %v570 = vpop.permute.xlu0 %569
      %vm578 = vcmask 261344
      %579 = vst.msk [vmem:[#allocation2] sm:$0xff] %vm578, %v558
      %580 = vst.msk [vmem:[#allocation2 + $0x8] sm:$0xff] %vm578, %v560
      %581 = vst.msk [vmem:[#allocation2 + $0x10] sm:$0xff] %vm578, %v562
      %582 = vst.msk [vmem:[#allocation2 + $0x18] sm:$0xff] %vm578, %v564
      %583 = vst.msk [vmem:[#allocation2 + $0x20] sm:$0xff] %vm578, %v566
      %584 = vst.msk [vmem:[#allocation2 + $0x28] sm:$0xff] %vm578, %v568
      %585 = vst.msk [vmem:[#allocation2 + $0x30] sm:$0xff] %vm578, %v570
      %586 = vrot.lane.b32.xlu0 %v338, 32
      %v587 = vpop.permute.xlu0 %586
      %588 = vrot.lane.b32.xlu0 %v339, 32
      %v589 = vpop.permute.xlu0 %588
      %590 = vrot.lane.b32.xlu0 %v340, 32
      %v591 = vpop.permute.xlu0 %590
      %592 = vrot.lane.b32.xlu0 %v341, 32
      %v593 = vpop.permute.xlu0 %592
      %594 = vrot.lane.b32.xlu0 %v342, 32
      %v595 = vpop.permute.xlu0 %594
      %596 = vrot.lane.b32.xlu0 %v343, 32
      %v597 = vpop.permute.xlu0 %596
      %598 = vrot.lane.b32.xlu0 %v344, 32
      %v599 = vpop.permute.xlu0 %598
      %vm607 = vcmask 294145
      %608 = vst.msk [vmem:[#allocation2 - $0x1] sm:$0xfe] %vm607, %v587
      %609 = vst.msk [vmem:[#allocation2 + $0x7] sm:$0xfe] %vm607, %v589
      %610 = vst.msk [vmem:[#allocation2 + $0xf] sm:$0xfe] %vm607, %v591
      %611 = vst.msk [vmem:[#allocation2 + $0x17] sm:$0xfe] %vm607, %v593
      %612 = vst.msk [vmem:[#allocation2 + $0x1f] sm:$0xfe] %vm607, %v595
      %613 = vst.msk [vmem:[#allocation2 + $0x27] sm:$0xfe] %vm607, %v597
      %614 = vst.msk [vmem:[#allocation2 + $0x2f] sm:$0xfe] %vm607, %v599
      %v615 = vld [vmem:[#allocation2] sm:$0xff]
      %v616 = vld [vmem:[#allocation2 + $0x8] sm:$0xff]
      %v617 = vld [vmem:[#allocation2 + $0x10] sm:$0xff]
      %v618 = vld [vmem:[#allocation2 + $0x18] sm:$0xff]
      %v619 = vld [vmem:[#allocation2 + $0x20] sm:$0xff]
      %v620 = vld [vmem:[#allocation2 + $0x28] sm:$0xff]
      %v621 = vld [vmem:[#allocation2 + $0x30] sm:$0xff]
      %v622 = vld [vmem:[#allocation2 + $0x38] sm:$0xff]
      %v623 = vpack.c.bf16 %v616, %v615
      %v624 = vpack.c.bf16 %v618, %v617
      %v625 = vpack.c.bf16 %v620, %v619
      %v626 = vpack.c.bf16 %v622, %v621
      %v627 = vld [vmem:[%s1] sm:$0xf]
      %v628 = vld [vmem:[%s1 + $0x4] sm:$0xf]
      %v629 = vld [vmem:[%s1 + $0x8] sm:$0xf]
      %v630 = vld [vmem:[%s1 + $0xc] sm:$0xf]
      %v631 = vld [vmem:[%s1 + $0x10] sm:$0x3]
      %v637 = vunpack.c.l.b16 %v627
      %v638 = vunpack.c.l.b16 %v628
      %v639 = vunpack.c.l.b16 %v629
      %v640 = vunpack.c.l.b16 %v630
      %v641 = vunpack.c.l.b16 %v631
      %v642 = vpack.c.b16 %v638, %v637
      %v643 = vpack.c.b16 %v640, %v639
      %v644 = vpack.c.b16 %v641, %v641
      %v648 = vsel %vm345, %v623, 0
      %v651 = vsel %vm345, %v624, 0
      %v654 = vsel %vm345, %v625, 0
      %v657 = vsel %vm345, %v626, 0
      %vm659 = vcmask 1041408
      %v661 = vsel %vm659, %v644, 0
      %663 = vmatprep.subr.bf16.mxu0 0
      %664 = vmatpush1.bf16.msra.mxu0 0
      %665 = vmatprep.subr.bf16.mxu0 0
      %666 = vmatpush1.bf16.msra.mxu0 0
      %667 = vmatprep.subr.bf16.mxu0 0
      %668 = vmatpush1.bf16.msra.mxu0 0
      %669 = vmatprep.subr.bf16.mxu0 0
      %670 = vmatpush1.bf16.msra.mxu0 0
      %671 = vmatprep.subr.bf16.mxu0 0
      %672 = vmatpush1.bf16.msra.mxu0 0
      %673 = vmatprep.subr.bf16.mxu0 0
      %674 = vmatpush1.bf16.msra.mxu0 %v661
      %675 = vmatprep.subr.bf16.mxu0 0
      %676 = vmatpush1.bf16.msra.mxu0 %v643
      %677 = vmatprep.subr.bf16.mxu0 0
      %678 = vmatpush1.bf16.msra.mxu0 %v642
      %679 = vmatprep.subr.bf16.mxu0 0
      %680 = vmatpush2.bf16.msra.mxu0 0
      %681 = vmatprep.subr.bf16.mxu0 0
      %682 = vmatpush2.bf16.msra.mxu0 0
      %683 = vmatprep.subr.bf16.mxu0 0
      %684 = vmatpush2.bf16.msra.mxu0 0
      %685 = vmatprep.subr.bf16.mxu0 0
      %686 = vmatpush2.bf16.msra.mxu0 0
      %687 = vmatprep.subr.bf16.mxu0 0
      %688 = vmatpush2.bf16.msra.mxu0 0
      %689 = vmatprep.subr.bf16.mxu0 0
      %690 = vmatpush2.bf16.msra.mxu0 0
      %691 = vmatprep.subr.bf16.mxu0 0
      %692 = vmatpush2.bf16.msra.mxu0 0
      %693 = vmatprep.subr.bf16.mxu0 0
      %694 = vmatpush2.bf16.msra.mxu0 0
      %695 = vmatprep.mubr.bf16.mxu0 0
      %696 = vmatmul.mubr.bf16.gmra.mxu0 %v648
      %v697 = vpop.f32.mrf.mxu0
      %v698 = vadd.f32 0.0, %v697
      %v699 = vpop.f32.mrf.mxu0
      %v700 = vpop.f32.mrf.mxu0
      %v701 = vadd.f32 0.0, %v700
      %v702 = vpop.f32.mrf.mxu0
      %703 = vmatprep.mubr.bf16.mxu0 0
      %704 = vmatmul.mubr.bf16.gmra.mxu0 %v651
      %v705 = vpop.f32.mrf.mxu0
      %v706 = vadd.f32 0.0, %v705
      %v707 = vpop.f32.mrf.mxu0
      %v708 = vpop.f32.mrf.mxu0
      %v709 = vadd.f32 0.0, %v708
      %v710 = vpop.f32.mrf.mxu0
      %711 = vmatprep.mubr.bf16.mxu0 0
      %712 = vmatmul.mubr.bf16.gmra.mxu0 %v654
      %v713 = vpop.f32.mrf.mxu0
      %v714 = vadd.f32 0.0, %v713
      %v715 = vpop.f32.mrf.mxu0
      %v716 = vpop.f32.mrf.mxu0
      %v717 = vadd.f32 0.0, %v716
      %v718 = vpop.f32.mrf.mxu0
      %719 = vmatprep.mubr.bf16.mxu0 0
      %720 = vmatmul.mubr.bf16.gmra.mxu0 %v657
      %v721 = vpop.f32.mrf.mxu0
      %v722 = vadd.f32 0.0, %v721
      %v723 = vpop.f32.mrf.mxu0
      %v724 = vpop.f32.mrf.mxu0
      %v725 = vadd.f32 0.0, %v724
      %v726 = vpop.f32.mrf.mxu0
      %727 = vdwg.mxu0
      %v728 = vld [vmem:[%s2] sm:$0x1]
      %v730 = vlaneseq
      %v731 = vshrl.u32 %v730, 7
      %v732 = vsub.s32 0, %v731
      %v733 = vrot.slane %v728, %v732
      %v735 = vmul.f32 %v698, %v733
      %v736 = vmul.f32 %v701, %v733
      %v737 = vmul.f32 %v706, %v733
      %v738 = vmul.f32 %v709, %v733
      %v739 = vmul.f32 %v714, %v733
      %v740 = vmul.f32 %v717, %v733
      %v741 = vmul.f32 %v722, %v733
      %v742 = vmul.f32 %v725, %v733
      %v743 = vld [vmem:[%s3] sm:$0x1]
      %v745 = vlaneseq
      %v746 = vshrl.u32 %v745, 7
      %v747 = vsub.s32 0, %v746
      %v748 = vrot.slane %v743, %v747
      %v750 = vadd.f32 %v735, %v748
      %v751 = vadd.f32 %v736, %v748
      %v752 = vadd.f32 %v737, %v748
      %v753 = vadd.f32 %v738, %v748
      %v754 = vadd.f32 %v739, %v748
      %v755 = vadd.f32 %v740, %v748
      %v756 = vadd.f32 %v741, %v748
      %v757 = vadd.f32 %v742, %v748
      %v758 = vmax.f32 %v750, 0.0
      %v759 = vmax.f32 %v751, 0.0
      %v760 = vmax.f32 %v752, 0.0
      %v761 = vmax.f32 %v753, 0.0
      %v762 = vmax.f32 %v754, 0.0
      %v763 = vmax.f32 %v755, 0.0
      %v764 = vmax.f32 %v756, 0.0
      %v765 = vmax.f32 %v757, 0.0
      %vm766 = vcmask 588800
      %767 = vst.msk [vmem:[#allocation3] sm:$0xff] %vm766, 0.0
      %768 = vst.msk [vmem:[#allocation3 + $0x8] sm:$0xff] %vm766, 0.0
      %769 = vst.msk [vmem:[#allocation3 + $0x10] sm:$0xff] %vm766, 0.0
      %770 = vst.msk [vmem:[#allocation3 + $0x18] sm:$0xff] %vm766, 0.0
      %771 = vst.msk [vmem:[#allocation3 + $0x20] sm:$0xff] %vm766, 0.0
      %772 = vst.msk [vmem:[#allocation3 + $0x28] sm:$0xff] %vm766, 0.0
      %773 = vst.msk [vmem:[#allocation3 + $0x30] sm:$0xff] %vm766, 0.0
      %774 = vst.msk [vmem:[#allocation3 + $0x38] sm:$0xff] %vm766, 0.0
      %s775 = scalar_lea.vmem [#allocation3], 8
      %vm776 = vcmask 63488
      %777 = vst.msk [vmem:[%s775 + $0x1] sm:$0x7f] %vm776, %v758
      %778 = vst.msk [vmem:[%s775 + $0x9] sm:$0x7f] %vm776, %v759
      %779 = vst.msk [vmem:[%s775 + $0x11] sm:$0x7f] %vm776, %v760
      %780 = vst.msk [vmem:[%s775 + $0x19] sm:$0x7f] %vm776, %v761
      %781 = vst.msk [vmem:[%s775 + $0x21] sm:$0x7f] %vm776, %v762
      %782 = vst.msk [vmem:[%s775 + $0x29] sm:$0x7f] %vm776, %v763
      %783 = vst.msk [vmem:[%s775 + $0x31] sm:$0x7f] %vm776, %v764
      %791 = vrot.lane.b32.xlu0 %v758, 8
      %v792 = vpop.permute.xlu0 %791
      %793 = vrot.lane.b32.xlu0 %v759, 8
      %v794 = vpop.permute.xlu0 %793
      %795 = vrot.lane.b32.xlu0 %v760, 8
      %v796 = vpop.permute.xlu0 %795
      %797 = vrot.lane.b32.xlu0 %v761, 8
      %v798 = vpop.permute.xlu0 %797
      %799 = vrot.lane.b32.xlu0 %v762, 8
      %v800 = vpop.permute.xlu0 %799
      %801 = vrot.lane.b32.xlu0 %v763, 8
      %v802 = vpop.permute.xlu0 %801
      %803 = vrot.lane.b32.xlu0 %v764, 8
      %v804 = vpop.permute.xlu0 %803
      %vm812 = vcmask 130112
      %813 = vst.msk [vmem:[%s775] sm:$0xff] %vm812, %v792
      %814 = vst.msk [vmem:[%s775 + $0x8] sm:$0xff] %vm812, %v794
      %815 = vst.msk [vmem:[%s775 + $0x10] sm:$0xff] %vm812, %v796
      %816 = vst.msk [vmem:[%s775 + $0x18] sm:$0xff] %vm812, %v798
      %817 = vst.msk [vmem:[%s775 + $0x20] sm:$0xff] %vm812, %v800
      %818 = vst.msk [vmem:[%s775 + $0x28] sm:$0xff] %vm812, %v802
      %819 = vst.msk [vmem:[%s775 + $0x30] sm:$0xff] %vm812, %v804
      %820 = vrot.lane.b32.xlu0 %v758, 16
      %v821 = vpop.permute.xlu0 %820
      %822 = vrot.lane.b32.xlu0 %v759, 16
      %v823 = vpop.permute.xlu0 %822
      %824 = vrot.lane.b32.xlu0 %v760, 16
      %v825 = vpop.permute.xlu0 %824
      %826 = vrot.lane.b32.xlu0 %v761, 16
      %v827 = vpop.permute.xlu0 %826
      %828 = vrot.lane.b32.xlu0 %v762, 16
      %v829 = vpop.permute.xlu0 %828
      %830 = vrot.lane.b32.xlu0 %v763, 16
      %v831 = vpop.permute.xlu0 %830
      %832 = vrot.lane.b32.xlu0 %v764, 16
      %v833 = vpop.permute.xlu0 %832
      %vm841 = vcmask 195713
      %842 = vst.msk [vmem:[%s775 - $0x1] sm:$0xfe] %vm841, %v821
      %843 = vst.msk [vmem:[%s775 + $0x7] sm:$0xfe] %vm841, %v823
      %844 = vst.msk [vmem:[%s775 + $0xf] sm:$0xfe] %vm841, %v825
      %845 = vst.msk [vmem:[%s775 + $0x17] sm:$0xfe] %vm841, %v827
      %846 = vst.msk [vmem:[%s775 + $0x1f] sm:$0xfe] %vm841, %v829
      %847 = vst.msk [vmem:[%s775 + $0x27] sm:$0xfe] %vm841, %v831
      %848 = vst.msk [vmem:[%s775 + $0x2f] sm:$0xfe] %vm841, %v833
      %850 = vrot.lane.b32.xlu0 %v758, 24
      %v851 = vpop.permute.xlu0 %850
      %852 = vrot.lane.b32.xlu0 %v759, 24
      %v853 = vpop.permute.xlu0 %852
      %854 = vrot.lane.b32.xlu0 %v760, 24
      %v855 = vpop.permute.xlu0 %854
      %856 = vrot.lane.b32.xlu0 %v761, 24
      %v857 = vpop.permute.xlu0 %856
      %858 = vrot.lane.b32.xlu0 %v762, 24
      %v859 = vpop.permute.xlu0 %858
      %860 = vrot.lane.b32.xlu0 %v763, 24
      %v861 = vpop.permute.xlu0 %860
      %862 = vrot.lane.b32.xlu0 %v764, 24
      %v863 = vpop.permute.xlu0 %862
      %864 = vrot.lane.b32.xlu0 %v765, 24
      %v865 = vpop.permute.xlu0 %864
      %vm874 = vcmask 260288
      %875 = vst.msk [vmem:[#allocation3 + $0x1] sm:$0x7f] %vm874, %v851
      %876 = vst.msk [vmem:[#allocation3 + $0x9] sm:$0x7f] %vm874, %v853
      %877 = vst.msk [vmem:[#allocation3 + $0x11] sm:$0x7f] %vm874, %v855
      %878 = vst.msk [vmem:[#allocation3 + $0x19] sm:$0x7f] %vm874, %v857
      %879 = vst.msk [vmem:[#allocation3 + $0x21] sm:$0x7f] %vm874, %v859
      %880 = vst.msk [vmem:[#allocation3 + $0x29] sm:$0x7f] %vm874, %v861
      %881 = vst.msk [vmem:[#allocation3 + $0x31] sm:$0x7f] %vm874, %v863
      %882 = vst.msk [vmem:[#allocation3 + $0x39] sm:$0x7f] %vm874, %v865
      %883 = vrot.lane.b32.xlu0 %v758, 32
      %v884 = vpop.permute.xlu0 %883
      %885 = vrot.lane.b32.xlu0 %v759, 32
      %v886 = vpop.permute.xlu0 %885
      %887 = vrot.lane.b32.xlu0 %v760, 32
      %v888 = vpop.permute.xlu0 %887
      %889 = vrot.lane.b32.xlu0 %v761, 32
      %v890 = vpop.permute.xlu0 %889
      %891 = vrot.lane.b32.xlu0 %v762, 32
      %v892 = vpop.permute.xlu0 %891
      %893 = vrot.lane.b32.xlu0 %v763, 32
      %v894 = vpop.permute.xlu0 %893
      %895 = vrot.lane.b32.xlu0 %v764, 32
      %v896 = vpop.permute.xlu0 %895
      %897 = vrot.lane.b32.xlu0 %v765, 32
      %v898 = vpop.permute.xlu0 %897
      %vm907 = vcmask 326912
      %908 = vst.msk [vmem:[#allocation3] sm:$0xff] %vm907, %v884
      %909 = vst.msk [vmem:[#allocation3 + $0x8] sm:$0xff] %vm907, %v886
      %910 = vst.msk [vmem:[#allocation3 + $0x10] sm:$0xff] %vm907, %v888
      %911 = vst.msk [vmem:[#allocation3 + $0x18] sm:$0xff] %vm907, %v890
      %912 = vst.msk [vmem:[#allocation3 + $0x20] sm:$0xff] %vm907, %v892
      %913 = vst.msk [vmem:[#allocation3 + $0x28] sm:$0xff] %vm907, %v894
      %914 = vst.msk [vmem:[#allocation3 + $0x30] sm:$0xff] %vm907, %v896
      %915 = vst.msk [vmem:[#allocation3 + $0x38] sm:$0xff] %vm907, %v898
      %916 = vrot.lane.b32.xlu0 %v758, 40
      %v917 = vpop.permute.xlu0 %916
      %918 = vrot.lane.b32.xlu0 %v759, 40
      %v919 = vpop.permute.xlu0 %918
      %920 = vrot.lane.b32.xlu0 %v760, 40
      %v921 = vpop.permute.xlu0 %920
      %922 = vrot.lane.b32.xlu0 %v761, 40
      %v923 = vpop.permute.xlu0 %922
      %924 = vrot.lane.b32.xlu0 %v762, 40
      %v925 = vpop.permute.xlu0 %924
      %926 = vrot.lane.b32.xlu0 %v763, 40
      %v927 = vpop.permute.xlu0 %926
      %928 = vrot.lane.b32.xlu0 %v764, 40
      %v929 = vpop.permute.xlu0 %928
      %930 = vrot.lane.b32.xlu0 %v765, 40
      %v931 = vpop.permute.xlu0 %930
      %vm940 = vcmask 392513
      %941 = vst.msk [vmem:[#allocation3 - $0x1] sm:$0xfe] %vm940, %v917
      %942 = vst.msk [vmem:[#allocation3 + $0x7] sm:$0xfe] %vm940, %v919
      %943 = vst.msk [vmem:[#allocation3 + $0xf] sm:$0xfe] %vm940, %v921
      %944 = vst.msk [vmem:[#allocation3 + $0x17] sm:$0xfe] %vm940, %v923
      %945 = vst.msk [vmem:[#allocation3 + $0x1f] sm:$0xfe] %vm940, %v925
      %946 = vst.msk [vmem:[#allocation3 + $0x27] sm:$0xfe] %vm940, %v927
      %947 = vst.msk [vmem:[#allocation3 + $0x2f] sm:$0xfe] %vm940, %v929
      %948 = vst.msk [vmem:[#allocation3 + $0x37] sm:$0xfe] %vm940, %v931
      %949 = vrot.lane.b32.xlu0 %v759, 48
      %v950 = vpop.permute.xlu0 %949
      %951 = vrot.lane.b32.xlu0 %v760, 48
      %v952 = vpop.permute.xlu0 %951
      %953 = vrot.lane.b32.xlu0 %v761, 48
      %v954 = vpop.permute.xlu0 %953
      %955 = vrot.lane.b32.xlu0 %v762, 48
      %v956 = vpop.permute.xlu0 %955
      %957 = vrot.lane.b32.xlu0 %v763, 48
      %v958 = vpop.permute.xlu0 %957
      %959 = vrot.lane.b32.xlu0 %v764, 48
      %v960 = vpop.permute.xlu0 %959
      %961 = vrot.lane.b32.xlu0 %v765, 48
      %v962 = vpop.permute.xlu0 %961
      %vm970 = vcmask 457088
      %971 = vst.msk [vmem:[#allocation3 + $0x1] sm:$0x7f] %vm970, %v950
      %972 = vst.msk [vmem:[#allocation3 + $0x9] sm:$0x7f] %vm970, %v952
      %973 = vst.msk [vmem:[#allocation3 + $0x11] sm:$0x7f] %vm970, %v954
      %974 = vst.msk [vmem:[#allocation3 + $0x19] sm:$0x7f] %vm970, %v956
      %975 = vst.msk [vmem:[#allocation3 + $0x21] sm:$0x7f] %vm970, %v958
      %976 = vst.msk [vmem:[#allocation3 + $0x29] sm:$0x7f] %vm970, %v960
      %977 = vst.msk [vmem:[#allocation3 + $0x31] sm:$0x7f] %vm970, %v962
      %978 = vrot.lane.b32.xlu0 %v759, 56
      %v979 = vpop.permute.xlu0 %978
      %980 = vrot.lane.b32.xlu0 %v760, 56
      %v981 = vpop.permute.xlu0 %980
      %982 = vrot.lane.b32.xlu0 %v761, 56
      %v983 = vpop.permute.xlu0 %982
      %984 = vrot.lane.b32.xlu0 %v762, 56
      %v985 = vpop.permute.xlu0 %984
      %986 = vrot.lane.b32.xlu0 %v763, 56
      %v987 = vpop.permute.xlu0 %986
      %988 = vrot.lane.b32.xlu0 %v764, 56
      %v989 = vpop.permute.xlu0 %988
      %990 = vrot.lane.b32.xlu0 %v765, 56
      %v991 = vpop.permute.xlu0 %990
      %vm999 = vcmask 523712
      %1000 = vst.msk [vmem:[#allocation3] sm:$0xff] %vm999, %v979
      %1001 = vst.msk [vmem:[#allocation3 + $0x8] sm:$0xff] %vm999, %v981
      %1002 = vst.msk [vmem:[#allocation3 + $0x10] sm:$0xff] %vm999, %v983
      %1003 = vst.msk [vmem:[#allocation3 + $0x18] sm:$0xff] %vm999, %v985
      %1004 = vst.msk [vmem:[#allocation3 + $0x20] sm:$0xff] %vm999, %v987
      %1005 = vst.msk [vmem:[#allocation3 + $0x28] sm:$0xff] %vm999, %v989
      %1006 = vst.msk [vmem:[#allocation3 + $0x30] sm:$0xff] %vm999, %v991
      %1007 = vrot.lane.b32.xlu0 %v759, 64
      %v1008 = vpop.permute.xlu0 %1007
      %1009 = vrot.lane.b32.xlu0 %v760, 64
      %v1010 = vpop.permute.xlu0 %1009
      %1011 = vrot.lane.b32.xlu0 %v761, 64
      %v1012 = vpop.permute.xlu0 %1011
      %1013 = vrot.lane.b32.xlu0 %v762, 64
      %v1014 = vpop.permute.xlu0 %1013
      %1015 = vrot.lane.b32.xlu0 %v763, 64
      %v1016 = vpop.permute.xlu0 %1015
      %1017 = vrot.lane.b32.xlu0 %v764, 64
      %v1018 = vpop.permute.xlu0 %1017
      %1019 = vrot.lane.b32.xlu0 %v765, 64
      %v1020 = vpop.permute.xlu0 %1019
      %vm1028 = vcmask 589313
      %1029 = vst.msk [vmem:[#allocation3 - $0x1] sm:$0xfe] %vm1028, %v1008
      %1030 = vst.msk [vmem:[#allocation3 + $0x7] sm:$0xfe] %vm1028, %v1010
      %1031 = vst.msk [vmem:[#allocation3 + $0xf] sm:$0xfe] %vm1028, %v1012
      %1032 = vst.msk [vmem:[#allocation3 + $0x17] sm:$0xfe] %vm1028, %v1014
      %1033 = vst.msk [vmem:[#allocation3 + $0x1f] sm:$0xfe] %vm1028, %v1016
      %1034 = vst.msk [vmem:[#allocation3 + $0x27] sm:$0xfe] %vm1028, %v1018
      %1035 = vst.msk [vmem:[#allocation3 + $0x2f] sm:$0xfe] %vm1028, %v1020
      %v1036 = vld [vmem:[#allocation3] sm:$0xff]
      %v1037 = vld [vmem:[#allocation3 + $0x8] sm:$0xff]
      %v1038 = vld [vmem:[#allocation3 + $0x10] sm:$0xff]
      %v1039 = vld [vmem:[#allocation3 + $0x18] sm:$0xff]
      %v1040 = vld [vmem:[#allocation3 + $0x20] sm:$0xff]
      %v1041 = vld [vmem:[#allocation3 + $0x28] sm:$0xff]
      %v1042 = vld [vmem:[#allocation3 + $0x30] sm:$0xff]
      %v1043 = vld [vmem:[#allocation3 + $0x38] sm:$0xff]
      %v1044 = vpack.c.bf16 %v1037, %v1036
      %v1045 = vpack.c.bf16 %v1039, %v1038
      %v1046 = vpack.c.bf16 %v1041, %v1040
      %v1047 = vpack.c.bf16 %v1043, %v1042
      %v1048 = vld [vmem:[%s4] sm:$0xf]
      %v1049 = vld [vmem:[%s4 + $0x4] sm:$0xf]
      %v1050 = vld [vmem:[%s4 + $0x8] sm:$0xf]
      %v1051 = vld [vmem:[%s4 + $0xc] sm:$0xf]
      %v1052 = vld [vmem:[%s4 + $0x10] sm:$0xf]
      %v1053 = vld [vmem:[%s4 + $0x14] sm:$0xf]
      %v1054 = vld [vmem:[%s4 + $0x18] sm:$0xf]
      %v1055 = vld [vmem:[%s4 + $0x1c] sm:$0xf]
      %v1056 = vld [vmem:[%s4 + $0x20] sm:$0xf]
      %v1066 = vunpack.c.l.b16 %v1048
      %v1067 = vunpack.c.l.b16 %v1049
      %v1068 = vunpack.c.l.b16 %v1050
      %v1069 = vunpack.c.l.b16 %v1051
      %v1070 = vunpack.c.l.b16 %v1052
      %v1071 = vunpack.c.l.b16 %v1053
      %v1072 = vunpack.c.l.b16 %v1054
      %v1073 = vunpack.c.l.b16 %v1055
      %v1074 = vunpack.c.l.b16 %v1056
      %v1075 = vpack.c.b16 %v1067, %v1066
      %v1076 = vpack.c.b16 %v1069, %v1068
      %v1077 = vpack.c.b16 %v1071, %v1070
      %v1078 = vpack.c.b16 %v1073, %v1072
      %v1079 = vpack.c.b16 %v1074, %v1074
      %v1085 = vsel %vm766, %v1044, 0
      %v1088 = vsel %vm766, %v1045, 0
      %v1091 = vsel %vm766, %v1046, 0
      %v1094 = vsel %vm766, %v1047, 0
      %vm1096 = vcmask 1043456
      %v1098 = vsel %vm1096, %v1079, 0
      %1100 = vmatprep.subr.bf16.mxu0 0
      %1101 = vmatpush1.bf16.msra.mxu0 0
      %1102 = vmatprep.subr.bf16.mxu0 0
      %1103 = vmatpush1.bf16.msra.mxu0 0
      %1104 = vmatprep.subr.bf16.mxu0 0
      %1105 = vmatpush1.bf16.msra.mxu0 0
      %1106 = vmatprep.subr.bf16.mxu0 0
      %1107 = vmatpush1.bf16.msra.mxu0 %v1098
      %1108 = vmatprep.subr.bf16.mxu0 0
      %1109 = vmatpush1.bf16.msra.mxu0 %v1078
      %1110 = vmatprep.subr.bf16.mxu0 0
      %1111 = vmatpush1.bf16.msra.mxu0 %v1077
      %1112 = vmatprep.subr.bf16.mxu0 0
      %1113 = vmatpush1.bf16.msra.mxu0 %v1076
      %1114 = vmatprep.subr.bf16.mxu0 0
      %1115 = vmatpush1.bf16.msra.mxu0 %v1075
      %1116 = vmatprep.subr.bf16.mxu0 0
      %1117 = vmatpush2.bf16.msra.mxu0 0
      %1118 = vmatprep.subr.bf16.mxu0 0
      %1119 = vmatpush2.bf16.msra.mxu0 0
      %1120 = vmatprep.subr.bf16.mxu0 0
      %1121 = vmatpush2.bf16.msra.mxu0 0
      %1122 = vmatprep.subr.bf16.mxu0 0
      %1123 = vmatpush2.bf16.msra.mxu0 0
      %1124 = vmatprep.subr.bf16.mxu0 0
      %1125 = vmatpush2.bf16.msra.mxu0 0
      %1126 = vmatprep.subr.bf16.mxu0 0
      %1127 = vmatpush2.bf16.msra.mxu0 0
      %1128 = vmatprep.subr.bf16.mxu0 0
      %1129 = vmatpush2.bf16.msra.mxu0 0
      %1130 = vmatprep.subr.bf16.mxu0 0
      %1131 = vmatpush2.bf16.msra.mxu0 0
      %1132 = vmatprep.mubr.bf16.mxu0 0
      %1133 = vmatmul.mubr.bf16.gmra.mxu0 %v1085
      %v1134 = vpop.f32.mrf.mxu0
      %v1135 = vadd.f32 0.0, %v1134
      %v1136 = vpop.f32.mrf.mxu0
      %v1137 = vpop.f32.mrf.mxu0
      %v1138 = vadd.f32 0.0, %v1137
      %v1139 = vpop.f32.mrf.mxu0
      %1140 = vmatprep.mubr.bf16.mxu0 0
      %1141 = vmatmul.mubr.bf16.gmra.mxu0 %v1088
      %v1142 = vpop.f32.mrf.mxu0
      %v1143 = vadd.f32 0.0, %v1142
      %v1144 = vpop.f32.mrf.mxu0
      %v1145 = vpop.f32.mrf.mxu0
      %v1146 = vadd.f32 0.0, %v1145
      %v1147 = vpop.f32.mrf.mxu0
      %1148 = vmatprep.mubr.bf16.mxu0 0
      %1149 = vmatmul.mubr.bf16.gmra.mxu0 %v1091
      %v1150 = vpop.f32.mrf.mxu0
      %v1151 = vadd.f32 0.0, %v1150
      %v1152 = vpop.f32.mrf.mxu0
      %v1153 = vpop.f32.mrf.mxu0
      %v1154 = vadd.f32 0.0, %v1153
      %v1155 = vpop.f32.mrf.mxu0
      %1156 = vmatprep.mubr.bf16.mxu0 0
      %1157 = vmatmul.mubr.bf16.gmra.mxu0 %v1094
      %v1158 = vpop.f32.mrf.mxu0
      %v1159 = vadd.f32 0.0, %v1158
      %v1160 = vpop.f32.mrf.mxu0
      %v1161 = vpop.f32.mrf.mxu0
      %v1162 = vadd.f32 0.0, %v1161
      %v1163 = vpop.f32.mrf.mxu0
      %1164 = vdwg.mxu0
      %v1165 = vld [vmem:[%s5] sm:$0x1]
      %v1167 = vlaneseq
      %v1168 = vshrl.u32 %v1167, 7
      %v1169 = vsub.s32 0, %v1168
      %v1170 = vrot.slane %v1165, %v1169
      %v1172 = vmul.f32 %v1135, %v1170
      %v1173 = vmul.f32 %v1138, %v1170
      %v1174 = vmul.f32 %v1143, %v1170
      %v1175 = vmul.f32 %v1146, %v1170
      %v1176 = vmul.f32 %v1151, %v1170
      %v1177 = vmul.f32 %v1154, %v1170
      %v1178 = vmul.f32 %v1159, %v1170
      %v1179 = vmul.f32 %v1162, %v1170
      %v1180 = vld [vmem:[%s6] sm:$0x1]
      %v1182 = vlaneseq
      %v1183 = vshrl.u32 %v1182, 7
      %v1184 = vsub.s32 0, %v1183
      %v1185 = vrot.slane %v1180, %v1184
      %v1187 = vadd.f32 %v1172, %v1185
      %v1188 = vadd.f32 %v1173, %v1185
      %v1189 = vadd.f32 %v1174, %v1185
      %v1190 = vadd.f32 %v1175, %v1185
      %v1191 = vadd.f32 %v1176, %v1185
      %v1192 = vadd.f32 %v1177, %v1185
      %v1193 = vadd.f32 %v1178, %v1185
      %v1194 = vadd.f32 %v1179, %v1185
      %v1195 = vmax.f32 %v1187, 0.0
      %v1196 = vmax.f32 %v1188, 0.0
      %v1197 = vmax.f32 %v1189, 0.0
      %v1198 = vmax.f32 %v1190, 0.0
      %v1199 = vmax.f32 %v1191, 0.0
      %v1200 = vmax.f32 %v1192, 0.0
      %v1201 = vmax.f32 %v1193, 0.0
      %v1202 = vmax.f32 %v1194, 0.0
      %1203 = vxpose.xlu0.b32.start [1/16] %v1195, 128
      %1204 = vxpose.xlu0.b32.cont [2/16] %v1196, 128
      %1205 = vxpose.xlu0.b32.cont [3/16] %v1197, 128
      %1206 = vxpose.xlu0.b32.cont [4/16] %v1198, 128
      %1207 = vxpose.xlu0.b32.cont [5/16] %v1199, 128
      %1208 = vxpose.xlu0.b32.cont [6/16] %v1200, 128
      %1209 = vxpose.xlu0.b32.cont [7/16] %v1201, 128
      %1210 = vxpose.xlu0.b32.cont [8/16] %v1202, 128
      %1211 = vxpose.xlu0.b32.cont [9/16] 0.0, 128
      %1212 = vxpose.xlu0.b32.cont [10/16] 0.0, 128
      %1213 = vxpose.xlu0.b32.cont [11/16] 0.0, 128
      %1214 = vxpose.xlu0.b32.cont [12/16] 0.0, 128
      %1215 = vxpose.xlu0.b32.cont [13/16] 0.0, 128
      %1216 = vxpose.xlu0.b32.cont [14/16] 0.0, 128
      %1217 = vxpose.xlu0.b32.cont [15/16] 0.0, 128
      %1218 = vxpose.xlu0.b32.end [16/16] 0.0, 128
      %v1219 = vpop.trf.xlu0
      %v1220 = vpop.trf.xlu0
      %v1221 = vpop.trf.xlu0
      %v1222 = vpop.trf.xlu0
      %v1223 = vpop.trf.xlu0
      %v1224 = vpop.trf.xlu0
      %v1225 = vpop.trf.xlu0
      %v1226 = vpop.trf.xlu0
      %v1227 = vpop.trf.xlu0
      %v1228 = vpop.trf.xlu0
      %v1229 = vpop.trf.xlu0
      %v1230 = vpop.trf.xlu0
      %v1231 = vpop.trf.xlu0
      %v1232 = vpop.trf.xlu0
      %v1233 = vpop.trf.xlu0
      %v1234 = vpop.trf.xlu0
      %vm1235 = vcmask 523264
      %1236 = vst.msk [vmem:[%s276] sm:$0xff] %vm1235, %v1219
      %p1237 = scmp.lt.s32.totalorder %s18, 1
      %s1238 = scalar_select %p1237, %s18, 1
      %s1239 = smul.addr %s1238, 8
      %s1240 = scalar_lea.vmem %s7, %s1239
      // Predicated region
      $region49: #{down_forward.1} parent=47 // pred_check
        %p1241 = pneg %p188
      $region50: #{down_forward.1} parent=47 // pred_check_branch
        %1243 = sbr.rel (%p1241) target = $region52
      $region51: #{down_forward.1} parent=47 // pred_region
        _
      $region52: #{down_forward.1} parent=47 // pred_fallthru
        _
    $region48: #{down_forward.1} parent=5 // pred_fallthru
      _
    %p1244 = scmp.le.s32.totalorder 2, %s13
    // Predicated region
    $region53: #{down_forward.1} parent=5 // pred_check
      %p1245 = pneg %p1244
    $region54: #{down_forward.1} parent=5 // pred_check_branch
      %1247 = sbr.rel (%p1245) target = $region56
    $region55: #{down_forward.1} parent=5 // pred_region
      %s1248 = ssub.s32 %s13, 2
      // Predicated region
      $region57: #{down_forward.1} parent=55 // pred_check
        %p1249 = pneg %p194
      $region58: #{down_forward.1} parent=55 // pred_check_branch
        %1251 = sbr.rel (%p1249) target = $region60
      $region59: #{down_forward.1} parent=55 // pred_region
        %p1252 = scmp.lt.s32.totalorder %s19, 1
        %s1253 = scalar_select %p1252, %s19, 1
        %s1254 = smul.addr %s1253, 8
        %s1255 = scalar_lea.vmem %s7, %s1254
      $region60: #{down_forward.1} parent=55 // pred_fallthru
        _
    $region56: #{down_forward.1} parent=5 // pred_fallthru
      _
  $region6: #{down_forward.1} parent=0 // loop_footer
    %s17 = sadd.s32 1, %s13
  $region7: #{down_forward.1} parent=0 // loop_footer_branch
    %12 = sbr.rel target = $region3
  $region8: #{down_forward.1} parent=0 // loop_exit
    _

</llo_original>
